<compile_context>
chip_gen: v7x
topology: tpu7x:2x2x1
jax: 0.10.0
libtpu: 0.0.40
codegen_flags: <defaults>
</compile_context>

<pallas_src>
import functools

import jax
import jax.numpy as jnp
from jax.experimental import pallas as pl
from jax.experimental.pallas import tpu as pltpu


def _round_up(x, m):
    return (x + m - 1) // m * m


def _pick_tile(dim, candidates):
    for c in candidates:
        if c <= dim and dim % c == 0:
            return c
    return dim


# ---------------------------------------------------------------------------
# Pallas kernel: fused  Y = relu( X @ W + shift )  — bf16 inputs, f32 compute.
# (BatchNorm per-channel scale is already folded into W; shift holds the rest.)
# ---------------------------------------------------------------------------
def matmul_shift_relu_kernel(x_ref, w_ref, shift_ref, o_ref, *, relu):
    y = jnp.dot(x_ref[...], w_ref[...], preferred_element_type=jnp.float32)
    y = y + shift_ref[...]
    if relu:
        y = jnp.maximum(y, 0.0)
    o_ref[...] = y.astype(o_ref.dtype)


def apply_layer(xm, w_pad, shift_pad, n_valid, *, relu=True, out_dtype=jnp.float32):
    """xm: (M, K) float rows; w_pad: (K, Np) bf16; shift_pad: (1, Np) f32."""
    M, K = xm.shape
    Kw, Np = w_pad.shape
    assert Kw == K, (Kw, K)

    x = xm.astype(jnp.bfloat16)

    # M: single full-dim block when small (no runtime padding); else pad+tile.
    if M <= 512:
        tm, Mp = M, M
    else:
        tm = 256
        Mp = _round_up(M, tm)
        x = jnp.pad(x, ((0, Mp - M), (0, 0)))
    # N: already padded to 128-multiple at prepare time (lane-dense stores).
    tn = Np if Np <= 512 else _pick_tile(Np, (512, 256, 128))
    grid = (Mp // tm, Np // tn)

    out = pl.pallas_call(
        functools.partial(matmul_shift_relu_kernel, relu=relu),
        out_shape=jax.ShapeDtypeStruct((Mp, Np), out_dtype),
        grid_spec=pltpu.PrefetchScalarGridSpec(
            num_scalar_prefetch=0,
            grid=grid,
            in_specs=[
                pl.BlockSpec((tm, K), lambda i, j: (i, 0)),
                pl.BlockSpec((K, tn), lambda i, j: (0, j)),
                pl.BlockSpec((1, tn), lambda i, j: (0, j)),
            ],
            out_specs=pl.BlockSpec((tm, tn), lambda i, j: (i, j)),
        ),
        compiler_params=pltpu.CompilerParams(
            dimension_semantics=("parallel", "parallel"),
            vmem_limit_bytes=32 * 1024 * 1024,
        ),
    )(x, w_pad, shift_pad)

    if Mp != M or Np != n_valid:
        out = out[:M, :n_valid]
    return out


# ---------------------------------------------------------------------------
# Patch extraction in NHWC via strided slices (no gather, no 6-D transpose).
# Column ordering of the patch matrix is (ki, kj, ci), ci fastest.
# ---------------------------------------------------------------------------
def extract_patches_nhwc(x, kh, kw, sh, sw):
    B, H, W, C = x.shape
    Ho = (H - kh) // sh + 1
    Wo = (W - kw) // sw + 1
    cols = []
    for ki in range(kh):
        for kj in range(kw):
            sl = jax.lax.slice(
                x,
                (0, ki, kj, 0),
                (B, ki + (Ho - 1) * sh + 1, kj + (Wo - 1) * sw + 1, C),
                (1, sh, sw, 1),
            )
            cols.append(sl)
    patches = jnp.concatenate(cols, axis=-1)  # (B, Ho, Wo, kh*kw*C)
    return patches.reshape(B * Ho * Wo, kh * kw * C), Ho, Wo


# ---------------------------------------------------------------------------
# EchoNet parameters (PyTorch layout) and one-time preprocessing.
# ---------------------------------------------------------------------------
_KERNELS = ((8, 8), (4, 4), (3, 3))
_STRIDES = ((4, 4), (2, 2), (1, 1))


def conv_output_dim(dim, kernel, stride):
    return tuple((d - k) // s + 1 for d, k, s in zip(dim, kernel, stride))


def init_echonet_params(key, conv1x1_dim, audio_shape, audio_feature_length):
    """Raw PyTorch-layout parameters: Conv2d weight (Cout,Cin,kh,kw) + bias + BN."""
    cin = audio_shape[0]
    dims = audio_shape[1:]
    for k, s in zip(_KERNELS, _STRIDES):
        dims = conv_output_dim(dims, k, s)
    flat_dim = conv1x1_dim * dims[0] * dims[1]

    def conv_block(key, cout, cin_, kh, kw):
        kw_, kb, kg, kbe, km, kv = jax.random.split(key, 6)
        return (
            0.1 * jax.random.normal(kw_, (cout, cin_, kh, kw), jnp.float32),  # weight
            0.1 * jax.random.normal(kb, (cout,), jnp.float32),                # bias
            1.0 + 0.1 * jax.random.normal(kg, (cout,), jnp.float32),          # bn gamma
            0.1 * jax.random.normal(kbe, (cout,), jnp.float32),               # bn beta
            0.1 * jax.random.normal(km, (cout,), jnp.float32),                # bn mean
            0.5 + 0.5 * jax.random.uniform(kv, (cout,), jnp.float32),         # bn var
        )

    k1, k2, k3, k4 = jax.random.split(key, 4)
    params = {
        "conv1": conv_block(k1, 32, cin, 8, 8),
        "conv2": conv_block(k2, 64, 32, 4, 4),
        "conv3": conv_block(k3, conv1x1_dim, 64, 3, 3),
        "conv1x1": conv_block(k4, audio_feature_length, flat_dim, 1, 1),
    }
    meta = {"cnn_dims": dims, "flat_dim": flat_dim}
    return params, meta


def _fold_and_pad(w2, bias, gamma, beta, mean, var):
    """w2: (K, N) f32 in patch-row layout.  Fold BN (eval, eps=1e-5), pad N to
    a multiple of 128 (lane-dense), cast to bf16.  K is left unpadded."""
    scale = gamma / jnp.sqrt(var + 1e-5)
    shift = (bias - mean) * scale + beta
    w2 = w2 * scale[None, :]
    K, N = w2.shape
    Np = _round_up(N, 128)
    w_pad = jnp.zeros((K, Np), jnp.float32).at[:, :N].set(w2).astype(jnp.bfloat16)
    s_pad = jnp.zeros((1, Np), jnp.float32).at[0, :N].set(shift)
    return w_pad, s_pad


def prepare_echonet_params(params, meta, conv1x1_dim, audio_feature_length):
    """One-time weight preprocessing, hoisted out of the forward path."""
    convs = []
    for name in ("conv1", "conv2", "conv3"):
        w, b, g, be, m, v = params[name]
        cout, cin, kh, kw = w.shape
        # (Cout,Cin,kh,kw) -> (kh,kw,Cin,Cout) -> (kh*kw*Cin, Cout): matches the
        # (ki, kj, ci) column ordering produced by extract_patches_nhwc.
        w2 = jnp.transpose(w, (2, 3, 1, 0)).reshape(kh * kw * cin, cout)
        w_pad, s_pad = _fold_and_pad(w2, b, g, be, m, v)
        convs.append({"w": w_pad, "shift": s_pad})

    # conv1x1 ("fully connected"): PyTorch flattens conv3's NCHW output in
    # (c, h, w) order; our activations are NHWC, so permute the FC weight's
    # input axis to (h, w, c) once here so semantics match exactly.
    hf, wf = meta["cnn_dims"]
    w, b, g, be, m, v = params["conv1x1"]
    F = w.shape[0]
    w2 = w.reshape(F, conv1x1_dim, hf, wf)
    w2 = jnp.transpose(w2, (2, 3, 1, 0)).reshape(hf * wf * conv1x1_dim, F)
    w_pad, s_pad = _fold_and_pad(w2, b, g, be, m, v)
    fc = {"w": w_pad, "shift": s_pad}

    arrays = {"convs": convs, "fc": fc}
    arrays = jax.tree_util.tree_map(jax.block_until_ready, arrays)  # materialize once
    static = {
        "kernels": _KERNELS,
        "strides": _STRIDES,
        "couts": (32, 64, conv1x1_dim),
        "fc_out": audio_feature_length,
    }
    return arrays, static


# ---------------------------------------------------------------------------
# Forward pass (matches EchoNet.forward semantics; BatchNorm in eval mode).
# ---------------------------------------------------------------------------
def echonet_forward(arrays, x, *, kernels, strides, couts, fc_out, repeat=4):
    """x: (B, C, H, W) float32.  Returns [0, 0, 0, features]."""
    B = x.shape[0]
    # NCHW -> NHWC once; cast to bf16 once (MXU operand dtype for every layer).
    x = jnp.transpose(x, (0, 2, 3, 1)).astype(jnp.bfloat16)

    for layer, (kh, kw), (sh, sw), cout in zip(arrays["convs"], kernels, strides, couts):
        patches, Ho, Wo = extract_patches_nhwc(x, kh, kw, sh, sw)   # (M, K) bf16
        y = apply_layer(patches, layer["w"], layer["shift"], cout,
                        relu=True, out_dtype=jnp.bfloat16)
        x = y.reshape(B, Ho, Wo, cout)                              # stay NHWC, bf16

    flat = x.reshape(B, -1)  # NHWC flatten; FC weight was permuted to match
    y = apply_layer(flat, arrays["fc"]["w"], arrays["fc"]["shift"], fc_out,
                    relu=True, out_dtype=jnp.float32)

    y = y.reshape(B, fc_out, 1, 1)
    y = jnp.tile(y, (1, 1, repeat, repeat))  # == tensor.repeat(1, 1, r, r)
    return [0, 0, 0, y]


if __name__ == "__main__":
    key = jax.random.PRNGKey(0)
    kp, kx = jax.random.split(key)

    # Small deterministic config consistent with the module's shape math:
    #   audio_shape = (C=2, H=44, W=44) -> conv chain -> (2, 2) spatial
    B = 2
    conv1x1_dim = 16
    audio_feature_length = 32
    audio_shape = (2, 44, 44)
    repeat = 4

    params, meta = init_echonet_params(kp, conv1x1_dim, audio_shape, audio_feature_length)
    arrays, static = prepare_echonet_params(params, meta, conv1x1_dim, audio_feature_length)
    x = jax.random.normal(kx, (B,) + audio_shape, jnp.float32)

    fwd = jax.jit(functools.partial(echonet_forward, repeat=repeat, **static))
    out = fwd(arrays, x)
    feats = jax.block_until_ready(out[3])

    assert feats.shape == (B, audio_feature_length, repeat, repeat), feats.shape
    assert bool(jnp.all(jnp.isfinite(feats)))
    assert out[0] == 0 and out[1] == 0 and out[2] == 0
    print("KERNEL_OK")
</pallas_src>

<mosaic_0001>
module attributes {stable_mosaic.version = 11 : i64} {
  func.func @matmul_shift_relu_kernel(%arg0: i32, %arg1: i32, %arg2: memref<200x128xbf16, #tpu.memory_space<vmem>>, %arg3: memref<128x128xbf16, #tpu.memory_space<vmem>>, %arg4: memref<1x128xf32, #tpu.memory_space<vmem>>, %arg5: memref<200x128xbf16, #tpu.memory_space<vmem>>) attributes {dimension_semantics = [#tpu.dimension_semantics<parallel>, #tpu.dimension_semantics<parallel>], iteration_bounds = array<i64: 1, 1>, scalar_prefetch = 0 : i64, scratch_operands = 0 : i64, tpu.core_type = #tpu.core_type<tc>, window_params = [{transform_indices = @transform_0, window_bounds = array<i64: 200, 128>}, {transform_indices = @transform_1, window_bounds = array<i64: 128, 128>}, {transform_indices = @transform_2, window_bounds = array<i64: 1, 128>}, {transform_indices = @transform_3, window_bounds = array<i64: 200, 128>}]} {
    %c0 = arith.constant 0 : index
    %c0_0 = arith.constant 0 : index
    %0 = vector.load %arg2[%c0, %c0_0] : memref<200x128xbf16, #tpu.memory_space<vmem>>, vector<200x128xbf16>
    %c0_1 = arith.constant 0 : index
    %c0_2 = arith.constant 0 : index
    %1 = vector.load %arg3[%c0_1, %c0_2] : memref<128x128xbf16, #tpu.memory_space<vmem>>, vector<128x128xbf16>
    %cst = arith.constant dense<0.000000e+00> : vector<200x128xf32>
    %2 = tpu.matmul %0, %1, %cst {dimension_numbers = #tpu.dot_dimension_numbers<[1], [0], [0], [1], [0, 0, 1, 1], [], []>} : vector<200x128xbf16>, vector<128x128xbf16>, vector<200x128xf32> -> vector<200x128xf32>
    %c0_3 = arith.constant 0 : index
    %c0_4 = arith.constant 0 : index
    %3 = vector.load %arg4[%c0_3, %c0_4] : memref<1x128xf32, #tpu.memory_space<vmem>>, vector<1x128xf32>
    %4 = vector.broadcast %3 : vector<1x128xf32> to vector<200x128xf32>
    %5 = arith.addf %2, %4 : vector<200x128xf32>
    %cst_5 = arith.constant 0.000000e+00 : f32
    %6 = vector.broadcast %cst_5 : f32 to vector<200x128xf32>
    %7 = arith.maximumf %5, %6 : vector<200x128xf32>
    %8 = arith.truncf %7 : vector<200x128xf32> to vector<200x128xbf16>
    %c0_6 = arith.constant 0 : index
    %c0_7 = arith.constant 0 : index
    %9 = vector.load %arg5[%c0_6, %c0_7] : memref<200x128xbf16, #tpu.memory_space<vmem>>, vector<200x128xbf16>
    tpu.vector_store %arg5[%c0_6, %c0_7], %8 {strides = array<i32>} : memref<200x128xbf16, #tpu.memory_space<vmem>>, vector<200x128xbf16>,
    return
  }
  func.func @transform_0(%arg0: i32, %arg1: i32) -> (i32, i32) {
    %c0_i32 = arith.constant 0 : i32
    %c0_i32_0 = arith.constant 0 : i32
    return %arg0, %c0_i32 : i32, i32
  }
  func.func @transform_1(%arg0: i32, %arg1: i32) -> (i32, i32) {
    %c0_i32 = arith.constant 0 : i32
    %c0_i32_0 = arith.constant 0 : i32
    return %c0_i32, %arg1 : i32, i32
  }
  func.func @transform_2(%arg0: i32, %arg1: i32) -> (i32, i32) {
    %c0_i32 = arith.constant 0 : i32
    %c0_i32_0 = arith.constant 0 : i32
    return %c0_i32, %arg1 : i32, i32
  }
  func.func @transform_3(%arg0: i32, %arg1: i32) -> (i32, i32) {
    %c0_i32 = arith.constant 0 : i32
    return %arg0, %arg1 : i32, i32
  }
}

module attributes {stable_mosaic.version = 11 : i64} {
  func.func @matmul_shift_relu_kernel(%arg0: i32, %arg1: i32, %arg2: memref<32x512xbf16, #tpu.memory_space<vmem>>, %arg3: memref<512x128xbf16, #tpu.memory_space<vmem>>, %arg4: memref<1x128xf32, #tpu.memory_space<vmem>>, %arg5: memref<32x128xbf16, #tpu.memory_space<vmem>>) attributes {dimension_semantics = [#tpu.dimension_semantics<parallel>, #tpu.dimension_semantics<parallel>], iteration_bounds = array<i64: 1, 1>, scalar_prefetch = 0 : i64, scratch_operands = 0 : i64, tpu.core_type = #tpu.core_type<tc>, window_params = [{transform_indices = @transform_0, window_bounds = array<i64: 32, 512>}, {transform_indices = @transform_1, window_bounds = array<i64: 512, 128>}, {transform_indices = @transform_2, window_bounds = array<i64: 1, 128>}, {transform_indices = @transform_3, window_bounds = array<i64: 32, 128>}]} {
    %c0 = arith.constant 0 : index
    %c0_0 = arith.constant 0 : index
    %0 = vector.load %arg2[%c0, %c0_0] : memref<32x512xbf16, #tpu.memory_space<vmem>>, vector<32x512xbf16>
    %c0_1 = arith.constant 0 : index
    %c0_2 = arith.constant 0 : index
    %1 = vector.load %arg3[%c0_1, %c0_2] : memref<512x128xbf16, #tpu.memory_space<vmem>>, vector<512x128xbf16>
    %cst = arith.constant dense<0.000000e+00> : vector<32x128xf32>
    %2 = tpu.matmul %0, %1, %cst {dimension_numbers = #tpu.dot_dimension_numbers<[1], [0], [0], [1], [0, 0, 1, 1], [], []>} : vector<32x512xbf16>, vector<512x128xbf16>, vector<32x128xf32> -> vector<32x128xf32>
    %c0_3 = arith.constant 0 : index
    %c0_4 = arith.constant 0 : index
    %3 = vector.load %arg4[%c0_3, %c0_4] : memref<1x128xf32, #tpu.memory_space<vmem>>, vector<1x128xf32>
    %4 = vector.broadcast %3 : vector<1x128xf32> to vector<32x128xf32>
    %5 = arith.addf %2, %4 : vector<32x128xf32>
    %cst_5 = arith.constant 0.000000e+00 : f32
    %6 = vector.broadcast %cst_5 : f32 to vector<32x128xf32>
    %7 = arith.maximumf %5, %6 : vector<32x128xf32>
    %8 = arith.truncf %7 : vector<32x128xf32> to vector<32x128xbf16>
    %c0_6 = arith.constant 0 : index
    %c0_7 = arith.constant 0 : index
    %9 = vector.load %arg5[%c0_6, %c0_7] : memref<32x128xbf16, #tpu.memory_space<vmem>>, vector<32x128xbf16>
    tpu.vector_store %arg5[%c0_6, %c0_7], %8 {strides = array<i32>} : memref<32x128xbf16, #tpu.memory_space<vmem>>, vector<32x128xbf16>,
    return
  }
  func.func @transform_0(%arg0: i32, %arg1: i32) -> (i32, i32) {
    %c0_i32 = arith.constant 0 : i32
    %c0_i32_0 = arith.constant 0 : i32
    return %arg0, %c0_i32 : i32, i32
  }
  func.func @transform_1(%arg0: i32, %arg1: i32) -> (i32, i32) {
    %c0_i32 = arith.constant 0 : i32
    %c0_i32_0 = arith.constant 0 : i32
    return %c0_i32, %arg1 : i32, i32
  }
  func.func @transform_2(%arg0: i32, %arg1: i32) -> (i32, i32) {
    %c0_i32 = arith.constant 0 : i32
    %c0_i32_0 = arith.constant 0 : i32
    return %c0_i32, %arg1 : i32, i32
  }
  func.func @transform_3(%arg0: i32, %arg1: i32) -> (i32, i32) {
    %c0_i32 = arith.constant 0 : i32
    return %arg0, %arg1 : i32, i32
  }
}

module attributes {stable_mosaic.version = 11 : i64} {
  func.func @matmul_shift_relu_kernel(%arg0: i32, %arg1: i32, %arg2: memref<8x576xbf16, #tpu.memory_space<vmem>>, %arg3: memref<576x128xbf16, #tpu.memory_space<vmem>>, %arg4: memref<1x128xf32, #tpu.memory_space<vmem>>, %arg5: memref<8x128xbf16, #tpu.memory_space<vmem>>) attributes {dimension_semantics = [#tpu.dimension_semantics<parallel>, #tpu.dimension_semantics<parallel>], iteration_bounds = array<i64: 1, 1>, scalar_prefetch = 0 : i64, scratch_operands = 0 : i64, tpu.core_type = #tpu.core_type<tc>, window_params = [{transform_indices = @transform_0, window_bounds = array<i64: 8, 576>}, {transform_indices = @transform_1, window_bounds = array<i64: 576, 128>}, {transform_indices = @transform_2, window_bounds = array<i64: 1, 128>}, {transform_indices = @transform_3, window_bounds = array<i64: 8, 128>}]} {
    %c0 = arith.constant 0 : index
    %c0_0 = arith.constant 0 : index
    %0 = vector.load %arg2[%c0, %c0_0] : memref<8x576xbf16, #tpu.memory_space<vmem>>, vector<8x576xbf16>
    %c0_1 = arith.constant 0 : index
    %c0_2 = arith.constant 0 : index
    %1 = vector.load %arg3[%c0_1, %c0_2] : memref<576x128xbf16, #tpu.memory_space<vmem>>, vector<576x128xbf16>
    %cst = arith.constant dense<0.000000e+00> : vector<8x128xf32>
    %2 = tpu.matmul %0, %1, %cst {dimension_numbers = #tpu.dot_dimension_numbers<[1], [0], [0], [1], [0, 0, 1, 1], [], []>} : vector<8x576xbf16>, vector<576x128xbf16>, vector<8x128xf32> -> vector<8x128xf32>
    %c0_3 = arith.constant 0 : index
    %c0_4 = arith.constant 0 : index
    %3 = vector.load %arg4[%c0_3, %c0_4] : memref<1x128xf32, #tpu.memory_space<vmem>>, vector<1x128xf32>
    %4 = vector.broadcast %3 : vector<1x128xf32> to vector<8x128xf32>
    %5 = arith.addf %2, %4 : vector<8x128xf32>
    %cst_5 = arith.constant 0.000000e+00 : f32
    %6 = vector.broadcast %cst_5 : f32 to vector<8x128xf32>
    %7 = arith.maximumf %5, %6 : vector<8x128xf32>
    %8 = arith.truncf %7 : vector<8x128xf32> to vector<8x128xbf16>
    %c0_6 = arith.constant 0 : index
    %c0_7 = arith.constant 0 : index
    %9 = vector.load %arg5[%c0_6, %c0_7] : memref<8x128xbf16, #tpu.memory_space<vmem>>, vector<8x128xbf16>
    tpu.vector_store %arg5[%c0_6, %c0_7], %8 {strides = array<i32>} : memref<8x128xbf16, #tpu.memory_space<vmem>>, vector<8x128xbf16>,
    return
  }
  func.func @transform_0(%arg0: i32, %arg1: i32) -> (i32, i32) {
    %c0_i32 = arith.constant 0 : i32
    %c0_i32_0 = arith.constant 0 : i32
    return %arg0, %c0_i32 : i32, i32
  }
  func.func @transform_1(%arg0: i32, %arg1: i32) -> (i32, i32) {
    %c0_i32 = arith.constant 0 : i32
    %c0_i32_0 = arith.constant 0 : i32
    return %c0_i32, %arg1 : i32, i32
  }
  func.func @transform_2(%arg0: i32, %arg1: i32) -> (i32, i32) {
    %c0_i32 = arith.constant 0 : i32
    %c0_i32_0 = arith.constant 0 : i32
    return %c0_i32, %arg1 : i32, i32
  }
  func.func @transform_3(%arg0: i32, %arg1: i32) -> (i32, i32) {
    %c0_i32 = arith.constant 0 : i32
    return %arg0, %arg1 : i32, i32
  }
}

module attributes {stable_mosaic.version = 11 : i64} {
  func.func @matmul_shift_relu_kernel(%arg0: i32, %arg1: i32, %arg2: memref<2x64xbf16, #tpu.memory_space<vmem>>, %arg3: memref<64x128xbf16, #tpu.memory_space<vmem>>, %arg4: memref<1x128xf32, #tpu.memory_space<vmem>>, %arg5: memref<2x128xf32, #tpu.memory_space<vmem>>) attributes {dimension_semantics = [#tpu.dimension_semantics<parallel>, #tpu.dimension_semantics<parallel>], iteration_bounds = array<i64: 1, 1>, scalar_prefetch = 0 : i64, scratch_operands = 0 : i64, tpu.core_type = #tpu.core_type<tc>, window_params = [{transform_indices = @transform_0, window_bounds = array<i64: 2, 64>}, {transform_indices = @transform_1, window_bounds = array<i64: 64, 128>}, {transform_indices = @transform_2, window_bounds = array<i64: 1, 128>}, {transform_indices = @transform_3, window_bounds = array<i64: 2, 128>}]} {
    %c0 = arith.constant 0 : index
    %c0_0 = arith.constant 0 : index
    %0 = vector.load %arg2[%c0, %c0_0] : memref<2x64xbf16, #tpu.memory_space<vmem>>, vector<2x64xbf16>
    %c0_1 = arith.constant 0 : index
    %c0_2 = arith.constant 0 : index
    %1 = vector.load %arg3[%c0_1, %c0_2] : memref<64x128xbf16, #tpu.memory_space<vmem>>, vector<64x128xbf16>
    %cst = arith.constant dense<0.000000e+00> : vector<2x128xf32>
    %2 = tpu.matmul %0, %1, %cst {dimension_numbers = #tpu.dot_dimension_numbers<[1], [0], [0], [1], [0, 0, 1, 1], [], []>} : vector<2x64xbf16>, vector<64x128xbf16>, vector<2x128xf32> -> vector<2x128xf32>
    %c0_3 = arith.constant 0 : index
    %c0_4 = arith.constant 0 : index
    %3 = vector.load %arg4[%c0_3, %c0_4] : memref<1x128xf32, #tpu.memory_space<vmem>>, vector<1x128xf32>
    %4 = vector.broadcast %3 : vector<1x128xf32> to vector<2x128xf32>
    %5 = arith.addf %2, %4 : vector<2x128xf32>
    %cst_5 = arith.constant 0.000000e+00 : f32
    %6 = vector.broadcast %cst_5 : f32 to vector<2x128xf32>
    %7 = arith.maximumf %5, %6 : vector<2x128xf32>
    %c0_6 = arith.constant 0 : index
    %c0_7 = arith.constant 0 : index
    %8 = vector.load %arg5[%c0_6, %c0_7] : memref<2x128xf32, #tpu.memory_space<vmem>>, vector<2x128xf32>
    tpu.vector_store %arg5[%c0_6, %c0_7], %7 {strides = array<i32>} : memref<2x128xf32, #tpu.memory_space<vmem>>, vector<2x128xf32>,
    return
  }
  func.func @transform_0(%arg0: i32, %arg1: i32) -> (i32, i32) {
    %c0_i32 = arith.constant 0 : i32
    %c0_i32_0 = arith.constant 0 : i32
    return %arg0, %c0_i32 : i32, i32
  }
  func.func @transform_1(%arg0: i32, %arg1: i32) -> (i32, i32) {
    %c0_i32 = arith.constant 0 : i32
    %c0_i32_0 = arith.constant 0 : i32
    return %c0_i32, %arg1 : i32, i32
  }
  func.func @transform_2(%arg0: i32, %arg1: i32) -> (i32, i32) {
    %c0_i32 = arith.constant 0 : i32
    %c0_i32_0 = arith.constant 0 : i32
    return %c0_i32, %arg1 : i32, i32
  }
  func.func @transform_3(%arg0: i32, %arg1: i32) -> (i32, i32) {
    %c0_i32 = arith.constant 0 : i32
    return %arg0, %arg1 : i32, i32
  }
}

</mosaic_0001>

<llo_original>
// kernel: echonet_forward.4
$region0: #{echonet_forward.4}
  #allocation0 [shape = 'u32[]', space=smem, size = 0x4, offset = 0x4, fixed_abs, tag = 'smem constant byte address 0x4 - core index']
  #allocation1 [shape = 'u32[144,128]{1,0:T(1,128)}', space=vmem, size = 0x12000, scoped, tag = 'internal scratch']
  %s0 = inlined_call_operand.vmem [shape: bf16[200,128], index: 0, kind: input, shape index: {}]
  %s1 = inlined_call_operand.vmem [shape: bf16[128,128], index: 1, kind: input, shape index: {}]
  %s2 = inlined_call_operand.vmem [shape: f32[1,128], index: 2, kind: input, shape index: {}]
  %s3 = inlined_call_operand.vmem [shape: bf16[200,128], index: 3, kind: output, shape index: {}]
  %s4 = sld [smem:[#allocation0]]
  $region22: #{echonet_forward.4} parent=0
    _
  %s6 = ssub.s32 1, %s4
  %s7 = scalar_select 0, %s6, %s4
  // Predicated region
  $region2: #{echonet_forward.4} parent=0 // pred_check
    _
  $region3: #{echonet_forward.4} parent=0 // pred_check_branch
    %9 = sbr.rel (0) target = $region5
  $region4: #{echonet_forward.4} parent=0 // pred_region
    _
  $region5: #{echonet_forward.4} parent=0 // pred_fallthru
    _
  // Predicated region
  $region6: #{echonet_forward.4} parent=0 // pred_check
    _
  $region7: #{echonet_forward.4} parent=0 // pred_check_branch
    %11 = sbr.rel (0) target = $region9
  $region8: #{echonet_forward.4} parent=0 // pred_region
    _
  $region9: #{echonet_forward.4} parent=0 // pred_fallthru
    _
  // Predicated region
  $region10: #{echonet_forward.4} parent=0 // pred_check
    _
  $region11: #{echonet_forward.4} parent=0 // pred_check_branch
    %13 = sbr.rel (0) target = $region13
  $region12: #{echonet_forward.4} parent=0 // pred_region
    _
  $region13: #{echonet_forward.4} parent=0 // pred_fallthru
    _
  %v15 = vld [vmem:[%s0] sm:$0xf]
  %v16 = vld [vmem:[%s0 + $0x4] sm:$0xf]
  %v17 = vld [vmem:[%s0 + $0x8] sm:$0xf]
  %v18 = vld [vmem:[%s0 + $0xc] sm:$0xf]
  %v19 = vld [vmem:[%s0 + $0x10] sm:$0xf]
  %v20 = vld [vmem:[%s0 + $0x14] sm:$0xf]
  %v21 = vld [vmem:[%s0 + $0x18] sm:$0xf]
  %v22 = vld [vmem:[%s0 + $0x1c] sm:$0xf]
  %v23 = vld [vmem:[%s0 + $0x20] sm:$0xf]
  %v24 = vld [vmem:[%s0 + $0x24] sm:$0xf]
  %v25 = vld [vmem:[%s0 + $0x28] sm:$0xf]
  %v26 = vld [vmem:[%s0 + $0x2c] sm:$0xf]
  %v27 = vld [vmem:[%s0 + $0x30] sm:$0xf]
  %v28 = vld [vmem:[%s0 + $0x34] sm:$0xf]
  %v29 = vld [vmem:[%s0 + $0x38] sm:$0xf]
  %v30 = vld [vmem:[%s0 + $0x3c] sm:$0xf]
  %v31 = vld [vmem:[%s0 + $0x40] sm:$0xf]
  %v32 = vld [vmem:[%s0 + $0x44] sm:$0xf]
  %v33 = vld [vmem:[%s0 + $0x48] sm:$0xf]
  %v34 = vld [vmem:[%s0 + $0x4c] sm:$0xf]
  %v35 = vld [vmem:[%s0 + $0x50] sm:$0xf]
  %v36 = vld [vmem:[%s0 + $0x54] sm:$0xf]
  %v37 = vld [vmem:[%s0 + $0x58] sm:$0xf]
  %v38 = vld [vmem:[%s0 + $0x5c] sm:$0xf]
  %v39 = vld [vmem:[%s0 + $0x60] sm:$0xf]
  %v40 = vld [vmem:[%s1] sm:$0xf]
  %v41 = vld [vmem:[%s1 + $0x4] sm:$0xf]
  %v42 = vld [vmem:[%s1 + $0x8] sm:$0xf]
  %v43 = vld [vmem:[%s1 + $0xc] sm:$0xf]
  %v44 = vld [vmem:[%s1 + $0x10] sm:$0xf]
  %v45 = vld [vmem:[%s1 + $0x14] sm:$0xf]
  %v46 = vld [vmem:[%s1 + $0x18] sm:$0xf]
  %v47 = vld [vmem:[%s1 + $0x1c] sm:$0xf]
  %v48 = vld [vmem:[%s1 + $0x20] sm:$0xf]
  %v49 = vld [vmem:[%s1 + $0x24] sm:$0xf]
  %v50 = vld [vmem:[%s1 + $0x28] sm:$0xf]
  %v51 = vld [vmem:[%s1 + $0x2c] sm:$0xf]
  %v52 = vld [vmem:[%s1 + $0x30] sm:$0xf]
  %v53 = vld [vmem:[%s1 + $0x34] sm:$0xf]
  %v54 = vld [vmem:[%s1 + $0x38] sm:$0xf]
  %v55 = vld [vmem:[%s1 + $0x3c] sm:$0xf]
  %v56 = vld [vmem:[%s2] sm:$0x1]
  %v58 = vlaneseq
  %v59 = vshrl.u32 %v58, 7
  %v60 = vsub.s32 0, %v59
  %v61 = vrot.slane %v56, %v60
  %v88 = vunpack.c.l.b16 %v15
  %v89 = vunpack.c.l.b16 %v16
  %v90 = vunpack.c.l.b16 %v17
  %v91 = vunpack.c.l.b16 %v18
  %v92 = vunpack.c.l.b16 %v19
  %v93 = vunpack.c.l.b16 %v20
  %v94 = vunpack.c.l.b16 %v21
  %v95 = vunpack.c.l.b16 %v22
  %v96 = vunpack.c.l.b16 %v23
  %v97 = vunpack.c.l.b16 %v24
  %v98 = vunpack.c.l.b16 %v25
  %v99 = vunpack.c.l.b16 %v26
  %v100 = vunpack.c.l.b16 %v27
  %v101 = vunpack.c.l.b16 %v28
  %v102 = vunpack.c.l.b16 %v29
  %v103 = vunpack.c.l.b16 %v30
  %v104 = vunpack.c.l.b16 %v31
  %v105 = vunpack.c.l.b16 %v32
  %v106 = vunpack.c.l.b16 %v33
  %v107 = vunpack.c.l.b16 %v34
  %v108 = vunpack.c.l.b16 %v35
  %v109 = vunpack.c.l.b16 %v36
  %v110 = vunpack.c.l.b16 %v37
  %v111 = vunpack.c.l.b16 %v38
  %v112 = vunpack.c.l.b16 %v39
  %v113 = vpack.c.b16 %v89, %v88
  %v114 = vpack.c.b16 %v91, %v90
  %v115 = vpack.c.b16 %v93, %v92
  %v116 = vpack.c.b16 %v95, %v94
  %v117 = vpack.c.b16 %v97, %v96
  %v118 = vpack.c.b16 %v99, %v98
  %v119 = vpack.c.b16 %v101, %v100
  %v120 = vpack.c.b16 %v103, %v102
  %v121 = vpack.c.b16 %v105, %v104
  %v122 = vpack.c.b16 %v107, %v106
  %v123 = vpack.c.b16 %v109, %v108
  %v124 = vpack.c.b16 %v111, %v110
  %v125 = vpack.c.b16 %v112, %v112
  %v155 = vunpack.c.l.b16 %v40
  %v156 = vunpack.c.l.b16 %v41
  %v157 = vunpack.c.l.b16 %v42
  %v158 = vunpack.c.l.b16 %v43
  %v159 = vunpack.c.l.b16 %v44
  %v160 = vunpack.c.l.b16 %v45
  %v161 = vunpack.c.l.b16 %v46
  %v162 = vunpack.c.l.b16 %v47
  %v163 = vunpack.c.l.b16 %v48
  %v164 = vunpack.c.l.b16 %v49
  %v165 = vunpack.c.l.b16 %v50
  %v166 = vunpack.c.l.b16 %v51
  %v167 = vunpack.c.l.b16 %v52
  %v168 = vunpack.c.l.b16 %v53
  %v169 = vunpack.c.l.b16 %v54
  %v170 = vunpack.c.l.b16 %v55
  %v171 = vpack.c.b16 %v156, %v155
  %v172 = vpack.c.b16 %v158, %v157
  %v173 = vpack.c.b16 %v160, %v159
  %v174 = vpack.c.b16 %v162, %v161
  %v175 = vpack.c.b16 %v164, %v163
  %v176 = vpack.c.b16 %v166, %v165
  %v177 = vpack.c.b16 %v168, %v167
  %v178 = vpack.c.b16 %v170, %v169
  %187 = vmatprep.subr.bf16.mxu0 0
  %188 = vmatpush1.bf16.msra.mxu0 %v171
  %189 = vmatprep.subr.bf16.mxu0 0
  %190 = vmatpush1.bf16.msra.mxu0 %v172
  %191 = vmatprep.subr.bf16.mxu0 0
  %192 = vmatpush1.bf16.msra.mxu0 %v173
  %193 = vmatprep.subr.bf16.mxu0 0
  %194 = vmatpush1.bf16.msra.mxu0 %v174
  %195 = vmatprep.subr.bf16.mxu0 0
  %196 = vmatpush1.bf16.msra.mxu0 %v175
  %197 = vmatprep.subr.bf16.mxu0 0
  %198 = vmatpush1.bf16.msra.mxu0 %v176
  %199 = vmatprep.subr.bf16.mxu0 0
  %200 = vmatpush1.bf16.msra.mxu0 %v177
  %201 = vmatprep.subr.bf16.mxu0 0
  %202 = vmatpush1.bf16.msra.mxu0 %v178
  %203 = vmatprep.subr.bf16.mxu0 0
  %204 = vmatpush1.bf16.msra.mxu0 0
  %205 = vmatprep.subr.bf16.mxu0 0
  %206 = vmatpush1.bf16.msra.mxu0 0
  %207 = vmatprep.subr.bf16.mxu0 0
  %208 = vmatpush1.bf16.msra.mxu0 0
  %209 = vmatprep.subr.bf16.mxu0 0
  %210 = vmatpush1.bf16.msra.mxu0 0
  %211 = vmatprep.subr.bf16.mxu0 0
  %212 = vmatpush1.bf16.msra.mxu0 0
  %213 = vmatprep.subr.bf16.mxu0 0
  %214 = vmatpush1.bf16.msra.mxu0 0
  %215 = vmatprep.subr.bf16.mxu0 0
  %216 = vmatpush1.bf16.msra.mxu0 0
  %217 = vmatprep.subr.bf16.mxu0 0
  %218 = vmatpush1.bf16.msra.mxu0 0
  %219 = vmatprep.mubr.bf16.mxu0 0
  %220 = vmatmul.mubr.bf16.gmra.mrb[0].mxu0 %v113
  %v221 = vpop.f32.mrb[0].mxu0
  %v222 = vadd.f32 %v61, %v221
  %v223 = vpop.f32.mrb[0].mxu0
  %v224 = vpop.f32.mrb[0].mxu0
  %v225 = vadd.f32 %v61, %v224
  %v226 = vpop.f32.mrb[0].mxu0
  %227 = vmatprep.mubr.bf16.mxu0 0
  %228 = vmatmul.mubr.bf16.gmra.mrb[0].mxu0 %v114
  %v229 = vpop.f32.mrb[0].mxu0
  %v230 = vadd.f32 %v61, %v229
  %v231 = vpop.f32.mrb[0].mxu0
  %v232 = vpop.f32.mrb[0].mxu0
  %v233 = vadd.f32 %v61, %v232
  %v234 = vpop.f32.mrb[0].mxu0
  %235 = vmatprep.mubr.bf16.mxu0 0
  %236 = vmatmul.mubr.bf16.gmra.mrb[0].mxu0 %v115
  %v237 = vpop.f32.mrb[0].mxu0
  %v238 = vadd.f32 %v61, %v237
  %v239 = vpop.f32.mrb[0].mxu0
  %v240 = vpop.f32.mrb[0].mxu0
  %v241 = vadd.f32 %v61, %v240
  %v242 = vpop.f32.mrb[0].mxu0
  %243 = vmatprep.mubr.bf16.mxu0 0
  %244 = vmatmul.mubr.bf16.gmra.mrb[0].mxu0 %v116
  %v245 = vpop.f32.mrb[0].mxu0
  %v246 = vadd.f32 %v61, %v245
  %v247 = vpop.f32.mrb[0].mxu0
  %v248 = vpop.f32.mrb[0].mxu0
  %v249 = vadd.f32 %v61, %v248
  %v250 = vpop.f32.mrb[0].mxu0
  %251 = vmatprep.mubr.bf16.mxu0 0
  %252 = vmatmul.mubr.bf16.gmra.mrb[0].mxu0 %v117
  %v253 = vpop.f32.mrb[0].mxu0
  %v254 = vadd.f32 %v61, %v253
  %v255 = vpop.f32.mrb[0].mxu0
  %v256 = vpop.f32.mrb[0].mxu0
  %v257 = vadd.f32 %v61, %v256
  %v258 = vpop.f32.mrb[0].mxu0
  %259 = vmatprep.mubr.bf16.mxu0 0
  %260 = vmatmul.mubr.bf16.gmra.mrb[0].mxu0 %v118
  %v261 = vpop.f32.mrb[0].mxu0
  %v262 = vadd.f32 %v61, %v261
  %v263 = vpop.f32.mrb[0].mxu0
  %v264 = vpop.f32.mrb[0].mxu0
  %v265 = vadd.f32 %v61, %v264
  %v266 = vpop.f32.mrb[0].mxu0
  %267 = vmatprep.mubr.bf16.mxu0 0
  %268 = vmatmul.mubr.bf16.gmra.mrb[0].mxu0 %v119
  %v269 = vpop.f32.mrb[0].mxu0
  %v270 = vadd.f32 %v61, %v269
  %v271 = vpop.f32.mrb[0].mxu0
  %v272 = vpop.f32.mrb[0].mxu0
  %v273 = vadd.f32 %v61, %v272
  %v274 = vpop.f32.mrb[0].mxu0
  %275 = vmatprep.mubr.bf16.mxu0 0
  %276 = vmatmul.mubr.bf16.gmra.mrb[0].mxu0 %v120
  %v277 = vpop.f32.mrb[0].mxu0
  %v278 = vadd.f32 %v61, %v277
  %v279 = vpop.f32.mrb[0].mxu0
  %v280 = vpop.f32.mrb[0].mxu0
  %v281 = vadd.f32 %v61, %v280
  %v282 = vpop.f32.mrb[0].mxu0
  %283 = vmatprep.mubr.bf16.mxu0 0
  %284 = vmatmul.mubr.bf16.gmra.mrb[0].mxu0 %v121
  %v285 = vpop.f32.mrb[0].mxu0
  %v286 = vadd.f32 %v61, %v285
  %v287 = vpop.f32.mrb[0].mxu0
  %v288 = vpop.f32.mrb[0].mxu0
  %v289 = vadd.f32 %v61, %v288
  %v290 = vpop.f32.mrb[0].mxu0
  %291 = vmatprep.mubr.bf16.mxu0 0
  %292 = vmatmul.mubr.bf16.gmra.mrb[0].mxu0 %v122
  %v293 = vpop.f32.mrb[0].mxu0
  %v294 = vadd.f32 %v61, %v293
  %v295 = vpop.f32.mrb[0].mxu0
  %v296 = vpop.f32.mrb[0].mxu0
  %v297 = vadd.f32 %v61, %v296
  %v298 = vpop.f32.mrb[0].mxu0
  %299 = vmatprep.mubr.bf16.mxu0 0
  %300 = vmatmul.mubr.bf16.gmra.mrb[0].mxu0 %v123
  %v301 = vpop.f32.mrb[0].mxu0
  %v302 = vadd.f32 %v61, %v301
  %v303 = vpop.f32.mrb[0].mxu0
  %v304 = vpop.f32.mrb[0].mxu0
  %v305 = vadd.f32 %v61, %v304
  %v306 = vpop.f32.mrb[0].mxu0
  %307 = vmatprep.mubr.bf16.mxu0 0
  %308 = vmatmul.mubr.bf16.gmra.mrb[0].mxu0 %v124
  %v309 = vpop.f32.mrb[0].mxu0
  %v310 = vadd.f32 %v61, %v309
  %v311 = vpop.f32.mrb[0].mxu0
  %v312 = vpop.f32.mrb[0].mxu0
  %v313 = vadd.f32 %v61, %v312
  %v314 = vpop.f32.mrb[0].mxu0
  %315 = vmatprep.mubr.bf16.mxu0 0
  %316 = vmatmul.mubr.bf16.gmra.mrb[0].mxu0 %v125
  %v317 = vpop.f32.mrb[0].mxu0
  %v318 = vadd.f32 %v61, %v317
  %v319 = vpop.f32.mrb[0].mxu0
  %v320 = vpop.f32.mrb[0].mxu0
  %v321 = vpop.f32.mrb[0].mxu0
  %322 = vdwg.mxu0
  %v323 = vmax.f32 %v222, 0.0
  %v324 = vmax.f32 %v225, 0.0
  %v325 = vmax.f32 %v230, 0.0
  %v326 = vmax.f32 %v233, 0.0
  %v327 = vmax.f32 %v238, 0.0
  %v328 = vmax.f32 %v241, 0.0
  %v329 = vmax.f32 %v246, 0.0
  %v330 = vmax.f32 %v249, 0.0
  %v331 = vmax.f32 %v254, 0.0
  %v332 = vmax.f32 %v257, 0.0
  %v333 = vmax.f32 %v262, 0.0
  %v334 = vmax.f32 %v265, 0.0
  %v335 = vmax.f32 %v270, 0.0
  %v336 = vmax.f32 %v273, 0.0
  %v337 = vmax.f32 %v278, 0.0
  %v338 = vmax.f32 %v281, 0.0
  %v339 = vmax.f32 %v286, 0.0
  %v340 = vmax.f32 %v289, 0.0
  %v341 = vmax.f32 %v294, 0.0
  %v342 = vmax.f32 %v297, 0.0
  %v343 = vmax.f32 %v302, 0.0
  %v344 = vmax.f32 %v305, 0.0
  %v345 = vmax.f32 %v310, 0.0
  %v346 = vmax.f32 %v313, 0.0
  %v347 = vmax.f32 %v318, 0.0
  %v348 = vpack.c.bf16 %v324, %v323
  %v349 = vpack.c.bf16 %v326, %v325
  %v350 = vpack.c.bf16 %v328, %v327
  %v351 = vpack.c.bf16 %v330, %v329
  %v352 = vpack.c.bf16 %v332, %v331
  %v353 = vpack.c.bf16 %v334, %v333
  %v354 = vpack.c.bf16 %v336, %v335
  %v355 = vpack.c.bf16 %v338, %v337
  %v356 = vpack.c.bf16 %v340, %v339
  %v357 = vpack.c.bf16 %v342, %v341
  %v358 = vpack.c.bf16 %v344, %v343
  %v359 = vpack.c.bf16 %v346, %v345
  %v360 = vpack.c.bf16 %v347, %v347
  %v374 = vunpack.c.l.b16 %v348
  %v375 = vunpack.c.h.b16 %v348
  %v376 = vunpack.c.l.b16 %v349
  %v377 = vunpack.c.h.b16 %v349
  %v378 = vunpack.c.l.b16 %v350
  %v379 = vunpack.c.h.b16 %v350
  %v380 = vunpack.c.l.b16 %v351
  %v381 = vunpack.c.h.b16 %v351
  %v382 = vunpack.c.l.b16 %v352
  %v383 = vunpack.c.h.b16 %v352
  %v384 = vunpack.c.l.b16 %v353
  %v385 = vunpack.c.h.b16 %v353
  %v386 = vunpack.c.l.b16 %v354
  %v387 = vunpack.c.h.b16 %v354
  %v388 = vunpack.c.l.b16 %v355
  %v389 = vunpack.c.h.b16 %v355
  %v390 = vunpack.c.l.b16 %v356
  %v391 = vunpack.c.h.b16 %v356
  %v392 = vunpack.c.l.b16 %v357
  %v393 = vunpack.c.h.b16 %v357
  %v394 = vunpack.c.l.b16 %v358
  %v395 = vunpack.c.h.b16 %v358
  %v396 = vunpack.c.l.b16 %v359
  %v397 = vunpack.c.h.b16 %v359
  %v398 = vunpack.c.l.b16 %v360
  %v399 = vpack.c.b16 %v374, %v374
  %v400 = vpack.c.b16 %v375, %v375
  %v401 = vpack.c.b16 %v376, %v376
  %v402 = vpack.c.b16 %v377, %v377
  %v403 = vpack.c.b16 %v378, %v378
  %v404 = vpack.c.b16 %v379, %v379
  %v405 = vpack.c.b16 %v380, %v380
  %v406 = vpack.c.b16 %v381, %v381
  %v407 = vpack.c.b16 %v382, %v382
  %v408 = vpack.c.b16 %v383, %v383
  %v409 = vpack.c.b16 %v384, %v384
  %v410 = vpack.c.b16 %v385, %v385
  %v411 = vpack.c.b16 %v386, %v386
  %v412 = vpack.c.b16 %v387, %v387
  %v413 = vpack.c.b16 %v388, %v388
  %v414 = vpack.c.b16 %v389, %v389
  %v415 = vpack.c.b16 %v390, %v390
  %v416 = vpack.c.b16 %v391, %v391
  %v417 = vpack.c.b16 %v392, %v392
  %v418 = vpack.c.b16 %v393, %v393
  %v419 = vpack.c.b16 %v394, %v394
  %v420 = vpack.c.b16 %v395, %v395
  %v421 = vpack.c.b16 %v396, %v396
  %v422 = vpack.c.b16 %v397, %v397
  %v423 = vpack.c.b16 %v398, %v398
  %449 = vst [vmem:[%s3] sm:$0xf] %v399
  %450 = vst [vmem:[%s3 + $0x4] sm:$0xf] %v400
  %451 = vst [vmem:[%s3 + $0x8] sm:$0xf] %v401
  %452 = vst [vmem:[%s3 + $0xc] sm:$0xf] %v402
  %453 = vst [vmem:[%s3 + $0x10] sm:$0xf] %v403
  %454 = vst [vmem:[%s3 + $0x14] sm:$0xf] %v404
  %455 = vst [vmem:[%s3 + $0x18] sm:$0xf] %v405
  %456 = vst [vmem:[%s3 + $0x1c] sm:$0xf] %v406
  %457 = vst [vmem:[%s3 + $0x20] sm:$0xf] %v407
  %458 = vst [vmem:[%s3 + $0x24] sm:$0xf] %v408
  %459 = vst [vmem:[%s3 + $0x28] sm:$0xf] %v409
  %460 = vst [vmem:[%s3 + $0x2c] sm:$0xf] %v410
  %461 = vst [vmem:[%s3 + $0x30] sm:$0xf] %v411
  %462 = vst [vmem:[%s3 + $0x34] sm:$0xf] %v412
  %463 = vst [vmem:[%s3 + $0x38] sm:$0xf] %v413
  %464 = vst [vmem:[%s3 + $0x3c] sm:$0xf] %v414
  %465 = vst [vmem:[%s3 + $0x40] sm:$0xf] %v415
  %466 = vst [vmem:[%s3 + $0x44] sm:$0xf] %v416
  %467 = vst [vmem:[%s3 + $0x48] sm:$0xf] %v417
  %468 = vst [vmem:[%s3 + $0x4c] sm:$0xf] %v418
  %469 = vst [vmem:[%s3 + $0x50] sm:$0xf] %v419
  %470 = vst [vmem:[%s3 + $0x54] sm:$0xf] %v420
  %471 = vst [vmem:[%s3 + $0x58] sm:$0xf] %v421
  %472 = vst [vmem:[%s3 + $0x5c] sm:$0xf] %v422
  %473 = vst [vmem:[%s3 + $0x60] sm:$0xf] %v423
  // Predicated region
  $region14: #{echonet_forward.4} parent=0 // pred_check
    _
  $region15: #{echonet_forward.4} parent=0 // pred_check_branch
    %475 = sbr.rel (0) target = $region17
  $region16: #{echonet_forward.4} parent=0 // pred_region
    _
  $region17: #{echonet_forward.4} parent=0 // pred_fallthru
    _
  // Predicated region
  $region18: #{echonet_forward.4} parent=0 // pred_check
    _
  $region19: #{echonet_forward.4} parent=0 // pred_check_branch
    %477 = sbr.rel (0) target = $region21
  $region20: #{echonet_forward.4} parent=0 // pred_region
    _
  $region21: #{echonet_forward.4} parent=0 // pred_fallthru
    _

// kernel: echonet_forward.5
$region0: #{echonet_forward.5}
  #allocation0 [shape = 'u32[]', space=smem, size = 0x4, offset = 0x4, fixed_abs, tag = 'smem constant byte address 0x4 - core index']
  #allocation1 [shape = 'u32[144,128]{1,0:T(1,128)}', space=vmem, size = 0x12000, scoped, tag = 'internal scratch']
  %s0 = inlined_call_operand.vmem [shape: bf16[32,512], index: 0, kind: input, shape index: {}]
  %s1 = inlined_call_operand.vmem [shape: bf16[512,128], index: 1, kind: input, shape index: {}]
  %s2 = inlined_call_operand.vmem [shape: f32[1,128], index: 2, kind: input, shape index: {}]
  %s3 = inlined_call_operand.vmem [shape: bf16[32,128], index: 3, kind: output, shape index: {}]
  %s4 = sld [smem:[#allocation0]]
  $region22: #{echonet_forward.5} parent=0
    _
  %s6 = ssub.s32 1, %s4
  %s7 = scalar_select 0, %s6, %s4
  // Predicated region
  $region2: #{echonet_forward.5} parent=0 // pred_check
    _
  $region3: #{echonet_forward.5} parent=0 // pred_check_branch
    %9 = sbr.rel (0) target = $region5
  $region4: #{echonet_forward.5} parent=0 // pred_region
    _
  $region5: #{echonet_forward.5} parent=0 // pred_fallthru
    _
  // Predicated region
  $region6: #{echonet_forward.5} parent=0 // pred_check
    _
  $region7: #{echonet_forward.5} parent=0 // pred_check_branch
    %11 = sbr.rel (0) target = $region9
  $region8: #{echonet_forward.5} parent=0 // pred_region
    _
  $region9: #{echonet_forward.5} parent=0 // pred_fallthru
    _
  // Predicated region
  $region10: #{echonet_forward.5} parent=0 // pred_check
    _
  $region11: #{echonet_forward.5} parent=0 // pred_check_branch
    %13 = sbr.rel (0) target = $region13
  $region12: #{echonet_forward.5} parent=0 // pred_region
    _
  $region13: #{echonet_forward.5} parent=0 // pred_fallthru
    _
  %v15 = vld [vmem:[%s0] sm:$0xff]
  %v16 = vld [vmem:[%s0 + $0x8] sm:$0xff]
  %v17 = vld [vmem:[%s0 + $0x10] sm:$0xff]
  %v18 = vld [vmem:[%s0 + $0x18] sm:$0xff]
  %v19 = vld [vmem:[%s0 + $0x20] sm:$0xff]
  %v20 = vld [vmem:[%s0 + $0x28] sm:$0xff]
  %v21 = vld [vmem:[%s0 + $0x30] sm:$0xff]
  %v22 = vld [vmem:[%s0 + $0x38] sm:$0xff]
  %v23 = vld [vmem:[%s1] sm:$0xf]
  %v24 = vld [vmem:[%s1 + $0x4] sm:$0xf]
  %v25 = vld [vmem:[%s1 + $0x8] sm:$0xf]
  %v26 = vld [vmem:[%s1 + $0xc] sm:$0xf]
  %v27 = vld [vmem:[%s1 + $0x10] sm:$0xf]
  %v28 = vld [vmem:[%s1 + $0x14] sm:$0xf]
  %v29 = vld [vmem:[%s1 + $0x18] sm:$0xf]
  %v30 = vld [vmem:[%s1 + $0x1c] sm:$0xf]
  %v31 = vld [vmem:[%s1 + $0x20] sm:$0xf]
  %v32 = vld [vmem:[%s1 + $0x24] sm:$0xf]
  %v33 = vld [vmem:[%s1 + $0x28] sm:$0xf]
  %v34 = vld [vmem:[%s1 + $0x2c] sm:$0xf]
  %v35 = vld [vmem:[%s1 + $0x30] sm:$0xf]
  %v36 = vld [vmem:[%s1 + $0x34] sm:$0xf]
  %v37 = vld [vmem:[%s1 + $0x38] sm:$0xf]
  %v38 = vld [vmem:[%s1 + $0x3c] sm:$0xf]
  %v39 = vld [vmem:[%s1 + $0x40] sm:$0xf]
  %v40 = vld [vmem:[%s1 + $0x44] sm:$0xf]
  %v41 = vld [vmem:[%s1 + $0x48] sm:$0xf]
  %v42 = vld [vmem:[%s1 + $0x4c] sm:$0xf]
  %v43 = vld [vmem:[%s1 + $0x50] sm:$0xf]
  %v44 = vld [vmem:[%s1 + $0x54] sm:$0xf]
  %v45 = vld [vmem:[%s1 + $0x58] sm:$0xf]
  %v46 = vld [vmem:[%s1 + $0x5c] sm:$0xf]
  %v47 = vld [vmem:[%s1 + $0x60] sm:$0xf]
  %v48 = vld [vmem:[%s1 + $0x64] sm:$0xf]
  %v49 = vld [vmem:[%s1 + $0x68] sm:$0xf]
  %v50 = vld [vmem:[%s1 + $0x6c] sm:$0xf]
  %v51 = vld [vmem:[%s1 + $0x70] sm:$0xf]
  %v52 = vld [vmem:[%s1 + $0x74] sm:$0xf]
  %v53 = vld [vmem:[%s1 + $0x78] sm:$0xf]
  %v54 = vld [vmem:[%s1 + $0x7c] sm:$0xf]
  %v55 = vld [vmem:[%s1 + $0x80] sm:$0xf]
  %v56 = vld [vmem:[%s1 + $0x84] sm:$0xf]
  %v57 = vld [vmem:[%s1 + $0x88] sm:$0xf]
  %v58 = vld [vmem:[%s1 + $0x8c] sm:$0xf]
  %v59 = vld [vmem:[%s1 + $0x90] sm:$0xf]
  %v60 = vld [vmem:[%s1 + $0x94] sm:$0xf]
  %v61 = vld [vmem:[%s1 + $0x98] sm:$0xf]
  %v62 = vld [vmem:[%s1 + $0x9c] sm:$0xf]
  %v63 = vld [vmem:[%s1 + $0xa0] sm:$0xf]
  %v64 = vld [vmem:[%s1 + $0xa4] sm:$0xf]
  %v65 = vld [vmem:[%s1 + $0xa8] sm:$0xf]
  %v66 = vld [vmem:[%s1 + $0xac] sm:$0xf]
  %v67 = vld [vmem:[%s1 + $0xb0] sm:$0xf]
  %v68 = vld [vmem:[%s1 + $0xb4] sm:$0xf]
  %v69 = vld [vmem:[%s1 + $0xb8] sm:$0xf]
  %v70 = vld [vmem:[%s1 + $0xbc] sm:$0xf]
  %v71 = vld [vmem:[%s1 + $0xc0] sm:$0xf]
  %v72 = vld [vmem:[%s1 + $0xc4] sm:$0xf]
  %v73 = vld [vmem:[%s1 + $0xc8] sm:$0xf]
  %v74 = vld [vmem:[%s1 + $0xcc] sm:$0xf]
  %v75 = vld [vmem:[%s1 + $0xd0] sm:$0xf]
  %v76 = vld [vmem:[%s1 + $0xd4] sm:$0xf]
  %v77 = vld [vmem:[%s1 + $0xd8] sm:$0xf]
  %v78 = vld [vmem:[%s1 + $0xdc] sm:$0xf]
  %v79 = vld [vmem:[%s1 + $0xe0] sm:$0xf]
  %v80 = vld [vmem:[%s1 + $0xe4] sm:$0xf]
  %v81 = vld [vmem:[%s1 + $0xe8] sm:$0xf]
  %v82 = vld [vmem:[%s1 + $0xec] sm:$0xf]
  %v83 = vld [vmem:[%s1 + $0xf0] sm:$0xf]
  %v84 = vld [vmem:[%s1 + $0xf4] sm:$0xf]
  %v85 = vld [vmem:[%s1 + $0xf8] sm:$0xf]
  %v86 = vld [vmem:[%s1 + $0xfc] sm:$0xf]
  %v87 = vld [vmem:[%s2] sm:$0x1]
  %v89 = vlaneseq
  %v90 = vshrl.u32 %v89, 7
  %v91 = vsub.s32 0, %v90
  %v92 = vrot.slane %v87, %v91
  %v102 = vunpack.c.l.b16 %v15
  %v103 = vunpack.c.h.b16 %v15
  %v104 = vunpack.c.l.b16 %v16
  %v105 = vunpack.c.h.b16 %v16
  %v106 = vunpack.c.l.b16 %v17
  %v107 = vunpack.c.h.b16 %v17
  %v108 = vunpack.c.l.b16 %v18
  %v109 = vunpack.c.h.b16 %v18
  %v110 = vunpack.c.l.b16 %v19
  %v111 = vunpack.c.h.b16 %v19
  %v112 = vunpack.c.l.b16 %v20
  %v113 = vunpack.c.h.b16 %v20
  %v114 = vunpack.c.l.b16 %v21
  %v115 = vunpack.c.h.b16 %v21
  %v116 = vunpack.c.l.b16 %v22
  %v117 = vunpack.c.h.b16 %v22
  %v118 = vpack.c.b16 %v106, %v102
  %v119 = vpack.c.b16 %v107, %v103
  %v120 = vpack.c.b16 %v108, %v104
  %v121 = vpack.c.b16 %v109, %v105
  %v122 = vpack.c.b16 %v114, %v110
  %v123 = vpack.c.b16 %v115, %v111
  %v124 = vpack.c.b16 %v116, %v112
  %v125 = vpack.c.b16 %v117, %v113
  %v198 = vunpack.c.l.b16 %v23
  %v199 = vunpack.c.l.b16 %v24
  %v200 = vunpack.c.l.b16 %v25
  %v201 = vunpack.c.l.b16 %v26
  %v202 = vunpack.c.l.b16 %v27
  %v203 = vunpack.c.l.b16 %v28
  %v204 = vunpack.c.l.b16 %v29
  %v205 = vunpack.c.l.b16 %v30
  %v206 = vunpack.c.l.b16 %v31
  %v207 = vunpack.c.l.b16 %v32
  %v208 = vunpack.c.l.b16 %v33
  %v209 = vunpack.c.l.b16 %v34
  %v210 = vunpack.c.l.b16 %v35
  %v211 = vunpack.c.l.b16 %v36
  %v212 = vunpack.c.l.b16 %v37
  %v213 = vunpack.c.l.b16 %v38
  %v214 = vunpack.c.l.b16 %v39
  %v215 = vunpack.c.l.b16 %v40
  %v216 = vunpack.c.l.b16 %v41
  %v217 = vunpack.c.l.b16 %v42
  %v218 = vunpack.c.l.b16 %v43
  %v219 = vunpack.c.l.b16 %v44
  %v220 = vunpack.c.l.b16 %v45
  %v221 = vunpack.c.l.b16 %v46
  %v222 = vunpack.c.l.b16 %v47
  %v223 = vunpack.c.l.b16 %v48
  %v224 = vunpack.c.l.b16 %v49
  %v225 = vunpack.c.l.b16 %v50
  %v226 = vunpack.c.l.b16 %v51
  %v227 = vunpack.c.l.b16 %v52
  %v228 = vunpack.c.l.b16 %v53
  %v229 = vunpack.c.l.b16 %v54
  %v230 = vunpack.c.l.b16 %v55
  %v231 = vunpack.c.l.b16 %v56
  %v232 = vunpack.c.l.b16 %v57
  %v233 = vunpack.c.l.b16 %v58
  %v234 = vunpack.c.l.b16 %v59
  %v235 = vunpack.c.l.b16 %v60
  %v236 = vunpack.c.l.b16 %v61
  %v237 = vunpack.c.l.b16 %v62
  %v238 = vunpack.c.l.b16 %v63
  %v239 = vunpack.c.l.b16 %v64
  %v240 = vunpack.c.l.b16 %v65
  %v241 = vunpack.c.l.b16 %v66
  %v242 = vunpack.c.l.b16 %v67
  %v243 = vunpack.c.l.b16 %v68
  %v244 = vunpack.c.l.b16 %v69
  %v245 = vunpack.c.l.b16 %v70
  %v246 = vunpack.c.l.b16 %v71
  %v247 = vunpack.c.l.b16 %v72
  %v248 = vunpack.c.l.b16 %v73
  %v249 = vunpack.c.l.b16 %v74
  %v250 = vunpack.c.l.b16 %v75
  %v251 = vunpack.c.l.b16 %v76
  %v252 = vunpack.c.l.b16 %v77
  %v253 = vunpack.c.l.b16 %v78
  %v254 = vunpack.c.l.b16 %v79
  %v255 = vunpack.c.l.b16 %v80
  %v256 = vunpack.c.l.b16 %v81
  %v257 = vunpack.c.l.b16 %v82
  %v258 = vunpack.c.l.b16 %v83
  %v259 = vunpack.c.l.b16 %v84
  %v260 = vunpack.c.l.b16 %v85
  %v261 = vunpack.c.l.b16 %v86
  %v262 = vpack.c.b16 %v199, %v198
  %v263 = vpack.c.b16 %v201, %v200
  %v264 = vpack.c.b16 %v203, %v202
  %v265 = vpack.c.b16 %v205, %v204
  %v266 = vpack.c.b16 %v207, %v206
  %v267 = vpack.c.b16 %v209, %v208
  %v268 = vpack.c.b16 %v211, %v210
  %v269 = vpack.c.b16 %v213, %v212
  %v270 = vpack.c.b16 %v215, %v214
  %v271 = vpack.c.b16 %v217, %v216
  %v272 = vpack.c.b16 %v219, %v218
  %v273 = vpack.c.b16 %v221, %v220
  %v274 = vpack.c.b16 %v223, %v222
  %v275 = vpack.c.b16 %v225, %v224
  %v276 = vpack.c.b16 %v227, %v226
  %v277 = vpack.c.b16 %v229, %v228
  %v278 = vpack.c.b16 %v231, %v230
  %v279 = vpack.c.b16 %v233, %v232
  %v280 = vpack.c.b16 %v235, %v234
  %v281 = vpack.c.b16 %v237, %v236
  %v282 = vpack.c.b16 %v239, %v238
  %v283 = vpack.c.b16 %v241, %v240
  %v284 = vpack.c.b16 %v243, %v242
  %v285 = vpack.c.b16 %v245, %v244
  %v286 = vpack.c.b16 %v247, %v246
  %v287 = vpack.c.b16 %v249, %v248
  %v288 = vpack.c.b16 %v251, %v250
  %v289 = vpack.c.b16 %v253, %v252
  %v290 = vpack.c.b16 %v255, %v254
  %v291 = vpack.c.b16 %v257, %v256
  %v292 = vpack.c.b16 %v259, %v258
  %v293 = vpack.c.b16 %v261, %v260
  %326 = vmatprep.subr.bf16.mxu0 0
  %327 = vmatpush1.bf16.msra.mxu0 %v262
  %328 = vmatprep.subr.bf16.mxu0 0
  %329 = vmatpush1.bf16.msra.mxu0 %v263
  %330 = vmatprep.subr.bf16.mxu0 0
  %331 = vmatpush1.bf16.msra.mxu0 %v264
  %332 = vmatprep.subr.bf16.mxu0 0
  %333 = vmatpush1.bf16.msra.mxu0 %v265
  %334 = vmatprep.subr.bf16.mxu0 0
  %335 = vmatpush1.bf16.msra.mxu0 %v266
  %336 = vmatprep.subr.bf16.mxu0 0
  %337 = vmatpush1.bf16.msra.mxu0 %v267
  %338 = vmatprep.subr.bf16.mxu0 0
  %339 = vmatpush1.bf16.msra.mxu0 %v268
  %340 = vmatprep.subr.bf16.mxu0 0
  %341 = vmatpush1.bf16.msra.mxu0 %v269
  %342 = vmatprep.subr.bf16.mxu0 0
  %343 = vmatpush1.bf16.msra.mxu0 %v270
  %344 = vmatprep.subr.bf16.mxu0 0
  %345 = vmatpush1.bf16.msra.mxu0 %v271
  %346 = vmatprep.subr.bf16.mxu0 0
  %347 = vmatpush1.bf16.msra.mxu0 %v272
  %348 = vmatprep.subr.bf16.mxu0 0
  %349 = vmatpush1.bf16.msra.mxu0 %v273
  %350 = vmatprep.subr.bf16.mxu0 0
  %351 = vmatpush1.bf16.msra.mxu0 %v274
  %352 = vmatprep.subr.bf16.mxu0 0
  %353 = vmatpush1.bf16.msra.mxu0 %v275
  %354 = vmatprep.subr.bf16.mxu0 0
  %355 = vmatpush1.bf16.msra.mxu0 %v276
  %356 = vmatprep.subr.bf16.mxu0 0
  %357 = vmatpush1.bf16.msra.mxu0 %v277
  %358 = vmatprep.mubr.bf16.mxu0 %v119
  %359 = vmatmul.mubr.bf16.gmra.mrb[0].mxu0 %v118
  %v360 = vpop.f32.mrb[0].mxu0
  %v361 = vadd.f32 %v92, %v360
  %v362 = vpop.f32.mrb[0].mxu0
  %v363 = vpop.f32.mrb[0].mxu0
  %v364 = vadd.f32 %v92, %v363
  %v365 = vpop.f32.mrb[0].mxu0
  %366 = vmatprep.mubr.bf16.mxu0 %v123
  %367 = vmatmul.mubr.bf16.gmra.mrb[0].mxu0 %v122
  %v368 = vpop.f32.mrb[0].mxu0
  %v369 = vadd.f32 %v92, %v368
  %v370 = vpop.f32.mrb[0].mxu0
  %v371 = vpop.f32.mrb[0].mxu0
  %v372 = vadd.f32 %v92, %v371
  %v373 = vpop.f32.mrb[0].mxu0
  %374 = vdwg.mxu0
  %375 = vmatprep.subr.bf16.mxu0 0
  %376 = vmatpush1.bf16.msra.mxu0 %v278
  %377 = vmatprep.subr.bf16.mxu0 0
  %378 = vmatpush1.bf16.msra.mxu0 %v279
  %379 = vmatprep.subr.bf16.mxu0 0
  %380 = vmatpush1.bf16.msra.mxu0 %v280
  %381 = vmatprep.subr.bf16.mxu0 0
  %382 = vmatpush1.bf16.msra.mxu0 %v281
  %383 = vmatprep.subr.bf16.mxu0 0
  %384 = vmatpush1.bf16.msra.mxu0 %v282
  %385 = vmatprep.subr.bf16.mxu0 0
  %386 = vmatpush1.bf16.msra.mxu0 %v283
  %387 = vmatprep.subr.bf16.mxu0 0
  %388 = vmatpush1.bf16.msra.mxu0 %v284
  %389 = vmatprep.subr.bf16.mxu0 0
  %390 = vmatpush1.bf16.msra.mxu0 %v285
  %391 = vmatprep.subr.bf16.mxu0 0
  %392 = vmatpush1.bf16.msra.mxu0 %v286
  %393 = vmatprep.subr.bf16.mxu0 0
  %394 = vmatpush1.bf16.msra.mxu0 %v287
  %395 = vmatprep.subr.bf16.mxu0 0
  %396 = vmatpush1.bf16.msra.mxu0 %v288
  %397 = vmatprep.subr.bf16.mxu0 0
  %398 = vmatpush1.bf16.msra.mxu0 %v289
  %399 = vmatprep.subr.bf16.mxu0 0
  %400 = vmatpush1.bf16.msra.mxu0 %v290
  %401 = vmatprep.subr.bf16.mxu0 0
  %402 = vmatpush1.bf16.msra.mxu0 %v291
  %403 = vmatprep.subr.bf16.mxu0 0
  %404 = vmatpush1.bf16.msra.mxu0 %v292
  %405 = vmatprep.subr.bf16.mxu0 0
  %406 = vmatpush1.bf16.msra.mxu0 %v293
  %407 = vmatprep.mubr.bf16.mxu0 %v121
  %408 = vmatmul.mubr.bf16.gmra.mrb[0].mxu0 %v120
  %v409 = vpop.f32.mrb[0].mxu0
  %v410 = vadd.f32 %v361, %v409
  %v411 = vpop.f32.mrb[0].mxu0
  %v412 = vpop.f32.mrb[0].mxu0
  %v413 = vadd.f32 %v364, %v412
  %v414 = vpop.f32.mrb[0].mxu0
  %415 = vmatprep.mubr.bf16.mxu0 %v125
  %416 = vmatmul.mubr.bf16.gmra.mrb[0].mxu0 %v124
  %v417 = vpop.f32.mrb[0].mxu0
  %v418 = vadd.f32 %v369, %v417
  %v419 = vpop.f32.mrb[0].mxu0
  %v420 = vpop.f32.mrb[0].mxu0
  %v421 = vadd.f32 %v372, %v420
  %v422 = vpop.f32.mrb[0].mxu0
  %423 = vdwg.mxu0
  %v424 = vmax.f32 %v410, 0.0
  %v425 = vmax.f32 %v413, 0.0
  %v426 = vmax.f32 %v418, 0.0
  %v427 = vmax.f32 %v421, 0.0
  %v428 = vpack.c.bf16 %v425, %v424
  %v429 = vpack.c.bf16 %v427, %v426
  %v432 = vunpack.c.l.b16 %v428
  %v433 = vunpack.c.h.b16 %v428
  %v434 = vunpack.c.l.b16 %v429
  %v435 = vunpack.c.h.b16 %v429
  %v436 = vpack.c.b16 %v432, %v432
  %v437 = vpack.c.b16 %v433, %v433
  %v438 = vpack.c.b16 %v434, %v434
  %v439 = vpack.c.b16 %v435, %v435
  %444 = vst [vmem:[%s3] sm:$0xf] %v436
  %445 = vst [vmem:[%s3 + $0x4] sm:$0xf] %v437
  %446 = vst [vmem:[%s3 + $0x8] sm:$0xf] %v438
  %447 = vst [vmem:[%s3 + $0xc] sm:$0xf] %v439
  // Predicated region
  $region14: #{echonet_forward.5} parent=0 // pred_check
    _
  $region15: #{echonet_forward.5} parent=0 // pred_check_branch
    %449 = sbr.rel (0) target = $region17
  $region16: #{echonet_forward.5} parent=0 // pred_region
    _
  $region17: #{echonet_forward.5} parent=0 // pred_fallthru
    _
  // Predicated region
  $region18: #{echonet_forward.5} parent=0 // pred_check
    _
  $region19: #{echonet_forward.5} parent=0 // pred_check_branch
    %451 = sbr.rel (0) target = $region21
  $region20: #{echonet_forward.5} parent=0 // pred_region
    _
  $region21: #{echonet_forward.5} parent=0 // pred_fallthru
    _

// kernel: echonet_forward.7
$region0: #{echonet_forward.7}
  #allocation0 [shape = 'u32[]', space=smem, size = 0x4, offset = 0x4, fixed_abs, tag = 'smem constant byte address 0x4 - core index']
  #allocation1 [shape = 'u32[144,128]{1,0:T(1,128)}', space=vmem, size = 0x12000, scoped, tag = 'internal scratch']
  %s0 = inlined_call_operand.vmem [shape: bf16[2,64], index: 0, kind: input, shape index: {}]
  %s1 = inlined_call_operand.vmem [shape: bf16[64,128], index: 1, kind: input, shape index: {}]
  %s2 = inlined_call_operand.vmem [shape: f32[1,128], index: 2, kind: input, shape index: {}]
  %s3 = inlined_call_operand.vmem [shape: f32[2,128], index: 3, kind: output, shape index: {}]
  %s4 = sld [smem:[#allocation0]]
  $region22: #{echonet_forward.7} parent=0
    _
  %s6 = ssub.s32 1, %s4
  %s7 = scalar_select 0, %s6, %s4
  // Predicated region
  $region2: #{echonet_forward.7} parent=0 // pred_check
    _
  $region3: #{echonet_forward.7} parent=0 // pred_check_branch
    %9 = sbr.rel (0) target = $region5
  $region4: #{echonet_forward.7} parent=0 // pred_region
    _
  $region5: #{echonet_forward.7} parent=0 // pred_fallthru
    _
  // Predicated region
  $region6: #{echonet_forward.7} parent=0 // pred_check
    _
  $region7: #{echonet_forward.7} parent=0 // pred_check_branch
    %11 = sbr.rel (0) target = $region9
  $region8: #{echonet_forward.7} parent=0 // pred_region
    _
  $region9: #{echonet_forward.7} parent=0 // pred_fallthru
    _
  // Predicated region
  $region10: #{echonet_forward.7} parent=0 // pred_check
    _
  $region11: #{echonet_forward.7} parent=0 // pred_check_branch
    %13 = sbr.rel (0) target = $region13
  $region12: #{echonet_forward.7} parent=0 // pred_region
    _
  $region13: #{echonet_forward.7} parent=0 // pred_fallthru
    _
  %v15 = vld [vmem:[%s0] sm:$0x1]
  %v16 = vld [vmem:[%s1] sm:$0xf]
  %v17 = vld [vmem:[%s1 + $0x4] sm:$0xf]
  %v18 = vld [vmem:[%s1 + $0x8] sm:$0xf]
  %v19 = vld [vmem:[%s1 + $0xc] sm:$0xf]
  %v20 = vld [vmem:[%s1 + $0x10] sm:$0xf]
  %v21 = vld [vmem:[%s1 + $0x14] sm:$0xf]
  %v22 = vld [vmem:[%s1 + $0x18] sm:$0xf]
  %v23 = vld [vmem:[%s1 + $0x1c] sm:$0xf]
  %v24 = vld [vmem:[%s2] sm:$0x1]
  %v26 = vlaneseq
  %v27 = vshrl.u32 %v26, 7
  %v28 = vsub.s32 0, %v27
  %v29 = vrot.slane %v24, %v28
  %v39 = vunpack.c.l.b16 %v16
  %v40 = vunpack.c.l.b16 %v17
  %v41 = vunpack.c.l.b16 %v18
  %v42 = vunpack.c.l.b16 %v19
  %v43 = vunpack.c.l.b16 %v20
  %v44 = vunpack.c.l.b16 %v21
  %v45 = vunpack.c.l.b16 %v22
  %v46 = vunpack.c.l.b16 %v23
  %v47 = vpack.c.b16 %v40, %v39
  %v48 = vpack.c.b16 %v42, %v41
  %v49 = vpack.c.b16 %v44, %v43
  %v50 = vpack.c.b16 %v46, %v45
  %vm55 = vcmask 523264
  %v57 = vsel %vm55, %v15, 0
  %59 = vmatprep.subr.bf16.mxu0 0
  %60 = vmatpush1.bf16.msra.mxu0 %v47
  %61 = vmatprep.subr.bf16.mxu0 0
  %62 = vmatpush1.bf16.msra.mxu0 %v48
  %63 = vmatprep.subr.bf16.mxu0 0
  %64 = vmatpush1.bf16.msra.mxu0 %v49
  %65 = vmatprep.subr.bf16.mxu0 0
  %66 = vmatpush1.bf16.msra.mxu0 %v50
  %67 = vmatprep.subr.bf16.mxu0 0
  %68 = vmatpush1.bf16.msra.mxu0 0
  %69 = vmatprep.subr.bf16.mxu0 0
  %70 = vmatpush1.bf16.msra.mxu0 0
  %71 = vmatprep.subr.bf16.mxu0 0
  %72 = vmatpush1.bf16.msra.mxu0 0
  %73 = vmatprep.subr.bf16.mxu0 0
  %74 = vmatpush1.bf16.msra.mxu0 0
  %75 = vmatprep.subr.bf16.mxu0 0
  %76 = vmatpush1.bf16.msra.mxu0 0
  %77 = vmatprep.subr.bf16.mxu0 0
  %78 = vmatpush1.bf16.msra.mxu0 0
  %79 = vmatprep.subr.bf16.mxu0 0
  %80 = vmatpush1.bf16.msra.mxu0 0
  %81 = vmatprep.subr.bf16.mxu0 0
  %82 = vmatpush1.bf16.msra.mxu0 0
  %83 = vmatprep.subr.bf16.mxu0 0
  %84 = vmatpush1.bf16.msra.mxu0 0
  %85 = vmatprep.subr.bf16.mxu0 0
  %86 = vmatpush1.bf16.msra.mxu0 0
  %87 = vmatprep.subr.bf16.mxu0 0
  %88 = vmatpush1.bf16.msra.mxu0 0
  %89 = vmatprep.subr.bf16.mxu0 0
  %90 = vmatpush1.bf16.msra.mxu0 0
  %91 = vmatprep.mubr.bf16.mxu0 0
  %92 = vmatmul.mubr.bf16.gmra.mrb[0].mxu0 %v57
  %v93 = vpop.f32.mrb[0].mxu0
  %v94 = vadd.f32 %v29, %v93
  %v95 = vpop.f32.mrb[0].mxu0
  %v96 = vpop.f32.mrb[0].mxu0
  %v97 = vpop.f32.mrb[0].mxu0
  %98 = vdwg.mxu0
  %v99 = vmax.f32 %v94, 0.0
  %100 = vst [vmem:[%s3] sm:$0x3] %v99
  // Predicated region
  $region14: #{echonet_forward.7} parent=0 // pred_check
    _
  $region15: #{echonet_forward.7} parent=0 // pred_check_branch
    %102 = sbr.rel (0) target = $region17
  $region16: #{echonet_forward.7} parent=0 // pred_region
    _
  $region17: #{echonet_forward.7} parent=0 // pred_fallthru
    _
  // Predicated region
  $region18: #{echonet_forward.7} parent=0 // pred_check
    _
  $region19: #{echonet_forward.7} parent=0 // pred_check_branch
    %104 = sbr.rel (0) target = $region21
  $region20: #{echonet_forward.7} parent=0 // pred_region
    _
  $region21: #{echonet_forward.7} parent=0 // pred_fallthru
    _

// kernel: echonet_forward.6
$region0: #{echonet_forward.6}
  #allocation0 [shape = 'u32[]', space=smem, size = 0x4, offset = 0x4, fixed_abs, tag = 'smem constant byte address 0x4 - core index']
  #allocation1 [shape = 'u32[144,128]{1,0:T(1,128)}', space=vmem, size = 0x12000, scoped, tag = 'internal scratch']
  %s0 = inlined_call_operand.vmem [shape: bf16[8,576], index: 0, kind: input, shape index: {}]
  %s1 = inlined_call_operand.vmem [shape: bf16[576,128], index: 1, kind: input, shape index: {}]
  %s2 = inlined_call_operand.vmem [shape: f32[1,128], index: 2, kind: input, shape index: {}]
  %s3 = inlined_call_operand.vmem [shape: bf16[8,128], index: 3, kind: output, shape index: {}]
  %s4 = sld [smem:[#allocation0]]
  $region22: #{echonet_forward.6} parent=0
    _
  %s6 = ssub.s32 1, %s4
  %s7 = scalar_select 0, %s6, %s4
  // Predicated region
  $region2: #{echonet_forward.6} parent=0 // pred_check
    _
  $region3: #{echonet_forward.6} parent=0 // pred_check_branch
    %9 = sbr.rel (0) target = $region5
  $region4: #{echonet_forward.6} parent=0 // pred_region
    _
  $region5: #{echonet_forward.6} parent=0 // pred_fallthru
    _
  // Predicated region
  $region6: #{echonet_forward.6} parent=0 // pred_check
    _
  $region7: #{echonet_forward.6} parent=0 // pred_check_branch
    %11 = sbr.rel (0) target = $region9
  $region8: #{echonet_forward.6} parent=0 // pred_region
    _
  $region9: #{echonet_forward.6} parent=0 // pred_fallthru
    _
  // Predicated region
  $region10: #{echonet_forward.6} parent=0 // pred_check
    _
  $region11: #{echonet_forward.6} parent=0 // pred_check_branch
    %13 = sbr.rel (0) target = $region13
  $region12: #{echonet_forward.6} parent=0 // pred_region
    _
  $region13: #{echonet_forward.6} parent=0 // pred_fallthru
    _
  %v15 = vld [vmem:[%s0] sm:$0xff]
  %v16 = vld [vmem:[%s0 + $0x8] sm:$0xff]
  %v17 = vld [vmem:[%s0 + $0x10] sm:$0xf]
  %v18 = vld [vmem:[%s1] sm:$0xf]
  %v19 = vld [vmem:[%s1 + $0x4] sm:$0xf]
  %v20 = vld [vmem:[%s1 + $0x8] sm:$0xf]
  %v21 = vld [vmem:[%s1 + $0xc] sm:$0xf]
  %v22 = vld [vmem:[%s1 + $0x10] sm:$0xf]
  %v23 = vld [vmem:[%s1 + $0x14] sm:$0xf]
  %v24 = vld [vmem:[%s1 + $0x18] sm:$0xf]
  %v25 = vld [vmem:[%s1 + $0x1c] sm:$0xf]
  %v26 = vld [vmem:[%s1 + $0x20] sm:$0xf]
  %v27 = vld [vmem:[%s1 + $0x24] sm:$0xf]
  %v28 = vld [vmem:[%s1 + $0x28] sm:$0xf]
  %v29 = vld [vmem:[%s1 + $0x2c] sm:$0xf]
  %v30 = vld [vmem:[%s1 + $0x30] sm:$0xf]
  %v31 = vld [vmem:[%s1 + $0x34] sm:$0xf]
  %v32 = vld [vmem:[%s1 + $0x38] sm:$0xf]
  %v33 = vld [vmem:[%s1 + $0x3c] sm:$0xf]
  %v34 = vld [vmem:[%s1 + $0x40] sm:$0xf]
  %v35 = vld [vmem:[%s1 + $0x44] sm:$0xf]
  %v36 = vld [vmem:[%s1 + $0x48] sm:$0xf]
  %v37 = vld [vmem:[%s1 + $0x4c] sm:$0xf]
  %v38 = vld [vmem:[%s1 + $0x50] sm:$0xf]
  %v39 = vld [vmem:[%s1 + $0x54] sm:$0xf]
  %v40 = vld [vmem:[%s1 + $0x58] sm:$0xf]
  %v41 = vld [vmem:[%s1 + $0x5c] sm:$0xf]
  %v42 = vld [vmem:[%s1 + $0x60] sm:$0xf]
  %v43 = vld [vmem:[%s1 + $0x64] sm:$0xf]
  %v44 = vld [vmem:[%s1 + $0x68] sm:$0xf]
  %v45 = vld [vmem:[%s1 + $0x6c] sm:$0xf]
  %v46 = vld [vmem:[%s1 + $0x70] sm:$0xf]
  %v47 = vld [vmem:[%s1 + $0x74] sm:$0xf]
  %v48 = vld [vmem:[%s1 + $0x78] sm:$0xf]
  %v49 = vld [vmem:[%s1 + $0x7c] sm:$0xf]
  %v50 = vld [vmem:[%s1 + $0x80] sm:$0xf]
  %v51 = vld [vmem:[%s1 + $0x84] sm:$0xf]
  %v52 = vld [vmem:[%s1 + $0x88] sm:$0xf]
  %v53 = vld [vmem:[%s1 + $0x8c] sm:$0xf]
  %v54 = vld [vmem:[%s1 + $0x90] sm:$0xf]
  %v55 = vld [vmem:[%s1 + $0x94] sm:$0xf]
  %v56 = vld [vmem:[%s1 + $0x98] sm:$0xf]
  %v57 = vld [vmem:[%s1 + $0x9c] sm:$0xf]
  %v58 = vld [vmem:[%s1 + $0xa0] sm:$0xf]
  %v59 = vld [vmem:[%s1 + $0xa4] sm:$0xf]
  %v60 = vld [vmem:[%s1 + $0xa8] sm:$0xf]
  %v61 = vld [vmem:[%s1 + $0xac] sm:$0xf]
  %v62 = vld [vmem:[%s1 + $0xb0] sm:$0xf]
  %v63 = vld [vmem:[%s1 + $0xb4] sm:$0xf]
  %v64 = vld [vmem:[%s1 + $0xb8] sm:$0xf]
  %v65 = vld [vmem:[%s1 + $0xbc] sm:$0xf]
  %v66 = vld [vmem:[%s1 + $0xc0] sm:$0xf]
  %v67 = vld [vmem:[%s1 + $0xc4] sm:$0xf]
  %v68 = vld [vmem:[%s1 + $0xc8] sm:$0xf]
  %v69 = vld [vmem:[%s1 + $0xcc] sm:$0xf]
  %v70 = vld [vmem:[%s1 + $0xd0] sm:$0xf]
  %v71 = vld [vmem:[%s1 + $0xd4] sm:$0xf]
  %v72 = vld [vmem:[%s1 + $0xd8] sm:$0xf]
  %v73 = vld [vmem:[%s1 + $0xdc] sm:$0xf]
  %v74 = vld [vmem:[%s1 + $0xe0] sm:$0xf]
  %v75 = vld [vmem:[%s1 + $0xe4] sm:$0xf]
  %v76 = vld [vmem:[%s1 + $0xe8] sm:$0xf]
  %v77 = vld [vmem:[%s1 + $0xec] sm:$0xf]
  %v78 = vld [vmem:[%s1 + $0xf0] sm:$0xf]
  %v79 = vld [vmem:[%s1 + $0xf4] sm:$0xf]
  %v80 = vld [vmem:[%s1 + $0xf8] sm:$0xf]
  %v81 = vld [vmem:[%s1 + $0xfc] sm:$0xf]
  %v82 = vld [vmem:[%s1 + $0x100] sm:$0xf]
  %v83 = vld [vmem:[%s1 + $0x104] sm:$0xf]
  %v84 = vld [vmem:[%s1 + $0x108] sm:$0xf]
  %v85 = vld [vmem:[%s1 + $0x10c] sm:$0xf]
  %v86 = vld [vmem:[%s1 + $0x110] sm:$0xf]
  %v87 = vld [vmem:[%s1 + $0x114] sm:$0xf]
  %v88 = vld [vmem:[%s1 + $0x118] sm:$0xf]
  %v89 = vld [vmem:[%s1 + $0x11c] sm:$0xf]
  %v90 = vld [vmem:[%s2] sm:$0x1]
  %v92 = vlaneseq
  %v93 = vshrl.u32 %v92, 7
  %v94 = vsub.s32 0, %v93
  %v95 = vrot.slane %v90, %v94
  %v100 = vunpack.c.l.b16 %v15
  %v101 = vunpack.c.h.b16 %v15
  %v102 = vunpack.c.l.b16 %v16
  %v103 = vunpack.c.h.b16 %v16
  %v104 = vunpack.c.l.b16 %v17
  %v105 = vpack.c.b16 %v100, %v100
  %v106 = vpack.c.b16 %v101, %v101
  %v107 = vpack.c.b16 %v102, %v102
  %v108 = vpack.c.b16 %v103, %v103
  %v109 = vpack.c.b16 %v104, %v104
  %v186 = vunpack.c.l.b16 %v18
  %v187 = vunpack.c.l.b16 %v19
  %v188 = vunpack.c.l.b16 %v20
  %v189 = vunpack.c.l.b16 %v21
  %v190 = vunpack.c.l.b16 %v22
  %v191 = vunpack.c.l.b16 %v23
  %v192 = vunpack.c.l.b16 %v24
  %v193 = vunpack.c.l.b16 %v25
  %v194 = vunpack.c.l.b16 %v26
  %v195 = vunpack.c.l.b16 %v27
  %v196 = vunpack.c.l.b16 %v28
  %v197 = vunpack.c.l.b16 %v29
  %v198 = vunpack.c.l.b16 %v30
  %v199 = vunpack.c.l.b16 %v31
  %v200 = vunpack.c.l.b16 %v32
  %v201 = vunpack.c.l.b16 %v33
  %v202 = vunpack.c.l.b16 %v34
  %v203 = vunpack.c.l.b16 %v35
  %v204 = vunpack.c.l.b16 %v36
  %v205 = vunpack.c.l.b16 %v37
  %v206 = vunpack.c.l.b16 %v38
  %v207 = vunpack.c.l.b16 %v39
  %v208 = vunpack.c.l.b16 %v40
  %v209 = vunpack.c.l.b16 %v41
  %v210 = vunpack.c.l.b16 %v42
  %v211 = vunpack.c.l.b16 %v43
  %v212 = vunpack.c.l.b16 %v44
  %v213 = vunpack.c.l.b16 %v45
  %v214 = vunpack.c.l.b16 %v46
  %v215 = vunpack.c.l.b16 %v47
  %v216 = vunpack.c.l.b16 %v48
  %v217 = vunpack.c.l.b16 %v49
  %v218 = vunpack.c.l.b16 %v50
  %v219 = vunpack.c.l.b16 %v51
  %v220 = vunpack.c.l.b16 %v52
  %v221 = vunpack.c.l.b16 %v53
  %v222 = vunpack.c.l.b16 %v54
  %v223 = vunpack.c.l.b16 %v55
  %v224 = vunpack.c.l.b16 %v56
  %v225 = vunpack.c.l.b16 %v57
  %v226 = vunpack.c.l.b16 %v58
  %v227 = vunpack.c.l.b16 %v59
  %v228 = vunpack.c.l.b16 %v60
  %v229 = vunpack.c.l.b16 %v61
  %v230 = vunpack.c.l.b16 %v62
  %v231 = vunpack.c.l.b16 %v63
  %v232 = vunpack.c.l.b16 %v64
  %v233 = vunpack.c.l.b16 %v65
  %v234 = vunpack.c.l.b16 %v66
  %v235 = vunpack.c.l.b16 %v67
  %v236 = vunpack.c.l.b16 %v68
  %v237 = vunpack.c.l.b16 %v69
  %v238 = vunpack.c.l.b16 %v70
  %v239 = vunpack.c.l.b16 %v71
  %v240 = vunpack.c.l.b16 %v72
  %v241 = vunpack.c.l.b16 %v73
  %v242 = vunpack.c.l.b16 %v74
  %v243 = vunpack.c.l.b16 %v75
  %v244 = vunpack.c.l.b16 %v76
  %v245 = vunpack.c.l.b16 %v77
  %v246 = vunpack.c.l.b16 %v78
  %v247 = vunpack.c.l.b16 %v79
  %v248 = vunpack.c.l.b16 %v80
  %v249 = vunpack.c.l.b16 %v81
  %v250 = vunpack.c.l.b16 %v82
  %v251 = vunpack.c.l.b16 %v83
  %v252 = vunpack.c.l.b16 %v84
  %v253 = vunpack.c.l.b16 %v85
  %v254 = vunpack.c.l.b16 %v86
  %v255 = vunpack.c.l.b16 %v87
  %v256 = vunpack.c.l.b16 %v88
  %v257 = vunpack.c.l.b16 %v89
  %v258 = vpack.c.b16 %v187, %v186
  %v259 = vpack.c.b16 %v189, %v188
  %v260 = vpack.c.b16 %v191, %v190
  %v261 = vpack.c.b16 %v193, %v192
  %v262 = vpack.c.b16 %v195, %v194
  %v263 = vpack.c.b16 %v197, %v196
  %v264 = vpack.c.b16 %v199, %v198
  %v265 = vpack.c.b16 %v201, %v200
  %v266 = vpack.c.b16 %v203, %v202
  %v267 = vpack.c.b16 %v205, %v204
  %v268 = vpack.c.b16 %v207, %v206
  %v269 = vpack.c.b16 %v209, %v208
  %v270 = vpack.c.b16 %v211, %v210
  %v271 = vpack.c.b16 %v213, %v212
  %v272 = vpack.c.b16 %v215, %v214
  %v273 = vpack.c.b16 %v217, %v216
  %v274 = vpack.c.b16 %v219, %v218
  %v275 = vpack.c.b16 %v221, %v220
  %v276 = vpack.c.b16 %v223, %v222
  %v277 = vpack.c.b16 %v225, %v224
  %v278 = vpack.c.b16 %v227, %v226
  %v279 = vpack.c.b16 %v229, %v228
  %v280 = vpack.c.b16 %v231, %v230
  %v281 = vpack.c.b16 %v233, %v232
  %v282 = vpack.c.b16 %v235, %v234
  %v283 = vpack.c.b16 %v237, %v236
  %v284 = vpack.c.b16 %v239, %v238
  %v285 = vpack.c.b16 %v241, %v240
  %v286 = vpack.c.b16 %v243, %v242
  %v287 = vpack.c.b16 %v245, %v244
  %v288 = vpack.c.b16 %v247, %v246
  %v289 = vpack.c.b16 %v249, %v248
  %v290 = vpack.c.b16 %v251, %v250
  %v291 = vpack.c.b16 %v253, %v252
  %v292 = vpack.c.b16 %v255, %v254
  %v293 = vpack.c.b16 %v257, %v256
  %vm330 = vcmask 523264
  %v332 = vsel %vm330, %v109, 0
  %334 = vmatprep.subr.bf16.mxu0 0
  %335 = vmatpush1.bf16.msra.mxu0 %v258
  %336 = vmatprep.subr.bf16.mxu0 0
  %337 = vmatpush1.bf16.msra.mxu0 %v259
  %338 = vmatprep.subr.bf16.mxu0 0
  %339 = vmatpush1.bf16.msra.mxu0 %v260
  %340 = vmatprep.subr.bf16.mxu0 0
  %341 = vmatpush1.bf16.msra.mxu0 %v261
  %342 = vmatprep.subr.bf16.mxu0 0
  %343 = vmatpush1.bf16.msra.mxu0 %v262
  %344 = vmatprep.subr.bf16.mxu0 0
  %345 = vmatpush1.bf16.msra.mxu0 %v263
  %346 = vmatprep.subr.bf16.mxu0 0
  %347 = vmatpush1.bf16.msra.mxu0 %v264
  %348 = vmatprep.subr.bf16.mxu0 0
  %349 = vmatpush1.bf16.msra.mxu0 %v265
  %350 = vmatprep.subr.bf16.mxu0 0
  %351 = vmatpush1.bf16.msra.mxu0 %v266
  %352 = vmatprep.subr.bf16.mxu0 0
  %353 = vmatpush1.bf16.msra.mxu0 %v267
  %354 = vmatprep.subr.bf16.mxu0 0
  %355 = vmatpush1.bf16.msra.mxu0 %v268
  %356 = vmatprep.subr.bf16.mxu0 0
  %357 = vmatpush1.bf16.msra.mxu0 %v269
  %358 = vmatprep.subr.bf16.mxu0 0
  %359 = vmatpush1.bf16.msra.mxu0 %v270
  %360 = vmatprep.subr.bf16.mxu0 0
  %361 = vmatpush1.bf16.msra.mxu0 %v271
  %362 = vmatprep.subr.bf16.mxu0 0
  %363 = vmatpush1.bf16.msra.mxu0 %v272
  %364 = vmatprep.subr.bf16.mxu0 0
  %365 = vmatpush1.bf16.msra.mxu0 %v273
  %366 = vmatprep.mubr.bf16.mxu0 %v106
  %367 = vmatmul.mubr.bf16.gmra.mrb[0].mxu0 %v105
  %v368 = vpop.f32.mrb[0].mxu0
  %v369 = vadd.f32 %v95, %v368
  %v370 = vpop.f32.mrb[0].mxu0
  %v371 = vpop.f32.mrb[0].mxu0
  %v372 = vpop.f32.mrb[0].mxu0
  %373 = vdwg.mxu0
  %374 = vmatprep.subr.bf16.mxu0 0
  %375 = vmatpush1.bf16.msra.mxu0 %v274
  %376 = vmatprep.subr.bf16.mxu0 0
  %377 = vmatpush1.bf16.msra.mxu0 %v275
  %378 = vmatprep.subr.bf16.mxu0 0
  %379 = vmatpush1.bf16.msra.mxu0 %v276
  %380 = vmatprep.subr.bf16.mxu0 0
  %381 = vmatpush1.bf16.msra.mxu0 %v277
  %382 = vmatprep.subr.bf16.mxu0 0
  %383 = vmatpush1.bf16.msra.mxu0 %v278
  %384 = vmatprep.subr.bf16.mxu0 0
  %385 = vmatpush1.bf16.msra.mxu0 %v279
  %386 = vmatprep.subr.bf16.mxu0 0
  %387 = vmatpush1.bf16.msra.mxu0 %v280
  %388 = vmatprep.subr.bf16.mxu0 0
  %389 = vmatpush1.bf16.msra.mxu0 %v281
  %390 = vmatprep.subr.bf16.mxu0 0
  %391 = vmatpush1.bf16.msra.mxu0 %v282
  %392 = vmatprep.subr.bf16.mxu0 0
  %393 = vmatpush1.bf16.msra.mxu0 %v283
  %394 = vmatprep.subr.bf16.mxu0 0
  %395 = vmatpush1.bf16.msra.mxu0 %v284
  %396 = vmatprep.subr.bf16.mxu0 0
  %397 = vmatpush1.bf16.msra.mxu0 %v285
  %398 = vmatprep.subr.bf16.mxu0 0
  %399 = vmatpush1.bf16.msra.mxu0 %v286
  %400 = vmatprep.subr.bf16.mxu0 0
  %401 = vmatpush1.bf16.msra.mxu0 %v287
  %402 = vmatprep.subr.bf16.mxu0 0
  %403 = vmatpush1.bf16.msra.mxu0 %v288
  %404 = vmatprep.subr.bf16.mxu0 0
  %405 = vmatpush1.bf16.msra.mxu0 %v289
  %406 = vmatprep.mubr.bf16.mxu0 %v108
  %407 = vmatmul.mubr.bf16.gmra.mrb[0].mxu0 %v107
  %v408 = vpop.f32.mrb[0].mxu0
  %v409 = vadd.f32 %v369, %v408
  %v410 = vpop.f32.mrb[0].mxu0
  %v411 = vpop.f32.mrb[0].mxu0
  %v412 = vpop.f32.mrb[0].mxu0
  %413 = vdwg.mxu0
  %414 = vmatprep.subr.bf16.mxu0 0
  %415 = vmatpush1.bf16.msra.mxu0 %v290
  %416 = vmatprep.subr.bf16.mxu0 0
  %417 = vmatpush1.bf16.msra.mxu0 %v291
  %418 = vmatprep.subr.bf16.mxu0 0
  %419 = vmatpush1.bf16.msra.mxu0 %v292
  %420 = vmatprep.subr.bf16.mxu0 0
  %421 = vmatpush1.bf16.msra.mxu0 %v293
  %422 = vmatprep.subr.bf16.mxu0 0
  %423 = vmatpush1.bf16.msra.mxu0 0
  %424 = vmatprep.subr.bf16.mxu0 0
  %425 = vmatpush1.bf16.msra.mxu0 0
  %426 = vmatprep.subr.bf16.mxu0 0
  %427 = vmatpush1.bf16.msra.mxu0 0
  %428 = vmatprep.subr.bf16.mxu0 0
  %429 = vmatpush1.bf16.msra.mxu0 0
  %430 = vmatprep.subr.bf16.mxu0 0
  %431 = vmatpush1.bf16.msra.mxu0 0
  %432 = vmatprep.subr.bf16.mxu0 0
  %433 = vmatpush1.bf16.msra.mxu0 0
  %434 = vmatprep.subr.bf16.mxu0 0
  %435 = vmatpush1.bf16.msra.mxu0 0
  %436 = vmatprep.subr.bf16.mxu0 0
  %437 = vmatpush1.bf16.msra.mxu0 0
  %438 = vmatprep.subr.bf16.mxu0 0
  %439 = vmatpush1.bf16.msra.mxu0 0
  %440 = vmatprep.subr.bf16.mxu0 0
  %441 = vmatpush1.bf16.msra.mxu0 0
  %442 = vmatprep.subr.bf16.mxu0 0
  %443 = vmatpush1.bf16.msra.mxu0 0
  %444 = vmatprep.subr.bf16.mxu0 0
  %445 = vmatpush1.bf16.msra.mxu0 0
  %446 = vmatprep.mubr.bf16.mxu0 0
  %447 = vmatmul.mubr.bf16.gmra.mrb[0].mxu0 %v332
  %v448 = vpop.f32.mrb[0].mxu0
  %v449 = vadd.f32 %v409, %v448
  %v450 = vpop.f32.mrb[0].mxu0
  %v451 = vpop.f32.mrb[0].mxu0
  %v452 = vpop.f32.mrb[0].mxu0
  %453 = vdwg.mxu0
  %v454 = vmax.f32 %v449, 0.0
  %v455 = vpack.c.bf16 %v454, %v454
  %456 = vst [vmem:[%s3] sm:$0xf] %v455
  // Predicated region
  $region14: #{echonet_forward.6} parent=0 // pred_check
    _
  $region15: #{echonet_forward.6} parent=0 // pred_check_branch
    %458 = sbr.rel (0) target = $region17
  $region16: #{echonet_forward.6} parent=0 // pred_region
    _
  $region17: #{echonet_forward.6} parent=0 // pred_fallthru
    _
  // Predicated region
  $region18: #{echonet_forward.6} parent=0 // pred_check
    _
  $region19: #{echonet_forward.6} parent=0 // pred_check_branch
    %460 = sbr.rel (0) target = $region21
  $region20: #{echonet_forward.6} parent=0 // pred_region
    _
  $region21: #{echonet_forward.6} parent=0 // pred_fallthru
    _

</llo_original>
